<compile_context>
chip_gen: v6e
topology: v6e:2x2x1
jax: 0.10.0
libtpu: 0.0.40
codegen_flags: <defaults>
</compile_context>

<pallas_src>
import math

import jax
import jax.numpy as jnp
import numpy as np
from jax.experimental import pallas as pl
from jax.experimental.pallas import tpu as pltpu


_VMEM = pl.BlockSpec(memory_space=pltpu.MemorySpace.VMEM)
_LANE = 128      # lane width: FC output padded to a multiple of this
_SUBLANE = 8     # sublane width: batch padded to a multiple of this


def _round_up(x, m):
    return max(m, ((x + m - 1) // m) * m)


# ----------------------------------------------------------------------------
# Fused Pallas kernel: L LSTM layers + FC, one invocation, no grid.
# ----------------------------------------------------------------------------
def _make_fused_kernel(num_layers, T, B, H):
    """Builds the fused kernel for static (num_layers, T, B, H).

    Ref layout (in order):
      x_ref:                        (T*B, D_in)   time-major, batch-padded, flat
      per layer l: wih_ref (D_l, 4H), whh_ref (H, 4H), b_ref (1, 4H)  [b_ih+b_hh]
      wfc_ref:                      (H, O_pad)    zero-padded to lane width
      bfc_ref:                      (1, O_pad)
      out_ref:                      (B, O_pad)    lane-dense store
    PyTorch gate order: i, f, g, o.
    """

    def kernel(*refs):
        x_ref = refs[0]
        layer_refs = []
        idx = 1
        for _ in range(num_layers):
            layer_refs.append((refs[idx], refs[idx + 1], refs[idx + 2]))
            idx += 3
        wfc_ref, bfc_ref, out_ref = refs[idx], refs[idx + 1], refs[idx + 2]

        acts = x_ref[...]                          # (T*B, D_in) current layer input
        last_h = None

        for l, (wih_ref, whh_ref, b_ref) in enumerate(layer_refs):
            wih = wih_ref[...]                     # (D_l, 4H)  hoisted ref reads
            whh = whh_ref[...]                     # (H,   4H)
            b = b_ref[...]                         # (1,   4H)

            # Hoisted input projection + bias for ALL timesteps at once:
            # one big MXU matmul instead of T tiny ones.
            xp = jnp.dot(acts, wih, preferred_element_type=jnp.float32) + b   # (T*B, 4H)

            h = jnp.zeros((B, H), jnp.float32)
            c = jnp.zeros((B, H), jnp.float32)
            hs = []
            for t in range(T):                     # fully unrolled; T is static
                # Serial path: one fused (B, H) @ (H, 4H) recurrent matmul.
                gates = xp[t * B:(t + 1) * B, :] + jnp.dot(
                    h, whh, preferred_element_type=jnp.float32)               # (B, 4H)
                i_g = jax.nn.sigmoid(gates[:, 0 * H:1 * H])                   # EUP
                f_g = jax.nn.sigmoid(gates[:, 1 * H:2 * H])
                g_g = jnp.tanh(gates[:, 2 * H:3 * H])
                o_g = jax.nn.sigmoid(gates[:, 3 * H:4 * H])
                c = f_g * c + i_g * g_g                                       # VPU
                h = o_g * jnp.tanh(c)
                if l + 1 < num_layers:             # last layer only needs h_T
                    hs.append(h)

            if l + 1 < num_layers:
                acts = jnp.concatenate(hs, axis=0)    # (T*B, H) → next layer input
            last_h = h

        # Final FC on the last timestep's hidden state; lane-dense (B, O_pad) store.
        out_ref[...] = (
            jnp.dot(last_h, wfc_ref[...], preferred_element_type=jnp.float32)
            + bfc_ref[...]
        )

    return kernel


# ----------------------------------------------------------------------------
# Module wrapper (forward-pass equivalent of the PyTorch StockLSTM)
# ----------------------------------------------------------------------------
class StockLSTMPallas:

    def __init__(self, input_dim, hidden_dim, num_layers, output_dim, key):
        self.input_dim = input_dim
        self.hidden_dim = hidden_dim
        self.num_layers = num_layers
        self.output_dim = output_dim

        H = hidden_dim
        k = 1.0 / math.sqrt(H)
        keys = jax.random.split(key, 4 * num_layers + 2)

        # nn.LSTM defaults: uniform(-1/sqrt(H), 1/sqrt(H)) for all params.
        # Kernel consumes transposed weights and a single combined bias.
        self.layers = []
        ki = 0
        for layer in range(num_layers):
            d_in = input_dim if layer == 0 else hidden_dim
            w_ih = jax.random.uniform(keys[ki], (4 * H, d_in), jnp.float32, -k, k); ki += 1
            w_hh = jax.random.uniform(keys[ki], (4 * H, H), jnp.float32, -k, k); ki += 1
            b_ih = jax.random.uniform(keys[ki], (4 * H,), jnp.float32, -k, k); ki += 1
            b_hh = jax.random.uniform(keys[ki], (4 * H,), jnp.float32, -k, k); ki += 1
            self.layers.append(
                (w_ih.T, w_hh.T, (b_ih + b_hh).reshape(1, 4 * H))
            )

        # fc: nn.Linear(hidden_dim, output_dim), zero-padded to the lane width
        # so the kernel's only HBM store is an unmasked, lane-dense vst.
        kf = 1.0 / math.sqrt(H)
        w_fc = jax.random.uniform(keys[ki], (output_dim, H), jnp.float32, -kf, kf); ki += 1
        b_fc = jax.random.uniform(keys[ki], (output_dim,), jnp.float32, -kf, kf)
        o_pad = _round_up(output_dim, _LANE)
        self.o_pad = o_pad
        self.w_fc_pad = jnp.zeros((H, o_pad), jnp.float32).at[:, :output_dim].set(w_fc.T)
        self.b_fc_pad = jnp.zeros((1, o_pad), jnp.float32).at[:, :output_dim].set(b_fc)

        num_layers_s = num_layers
        hidden_s = hidden_dim
        output_s = output_dim

        def fwd(x, layer_params, w_fc_pad, b_fc_pad):
            # x: (B, T, input_dim), batch_first — matches the PyTorch input.
            B, T, D = x.shape
            b_pad = _round_up(B, _SUBLANE)
            x_p = jnp.pad(x.astype(jnp.float32), ((0, b_pad - B), (0, 0), (0, 0)))
            # Time-major, flattened over (T, B) so every kernel array is 2D and
            # every static timestep slice is sublane-aligned (b_pad % 8 == 0).
            x_flat = jnp.transpose(x_p, (1, 0, 2)).reshape(T * b_pad, D)

            kernel = _make_fused_kernel(num_layers_s, T, b_pad, hidden_s)
            flat_args = [x_flat]
            for (wih, whh, b) in layer_params:
                flat_args += [wih, whh, b]
            flat_args += [w_fc_pad, b_fc_pad]

            out_pad = pl.pallas_call(
                kernel,
                out_shape=jax.ShapeDtypeStruct((b_pad, w_fc_pad.shape[1]), jnp.float32),
                in_specs=[_VMEM] * len(flat_args),
                out_specs=_VMEM,
            )(*flat_args)
            return out_pad[:B, :output_s]

        self._fwd = jax.jit(fwd)

    def __call__(self, x):
        return self._fwd(x, self.layers, self.w_fc_pad, self.b_fc_pad)

    # Pure-JAX reference (same params) for a numerical sanity check.
    def reference(self, x):
        seq = jnp.transpose(x, (1, 0, 2)).astype(jnp.float32)   # (T, B, D)
        H = self.hidden_dim
        for (wih, whh, b) in self.layers:
            T, B, _ = seq.shape
            h = jnp.zeros((B, H), jnp.float32)
            c = jnp.zeros((B, H), jnp.float32)
            outs = []
            for t in range(T):
                gates = seq[t] @ wih + h @ whh + b
                i = jax.nn.sigmoid(gates[:, 0 * H:1 * H])
                f = jax.nn.sigmoid(gates[:, 1 * H:2 * H])
                g = jnp.tanh(gates[:, 2 * H:3 * H])
                o = jax.nn.sigmoid(gates[:, 3 * H:4 * H])
                c = f * c + i * g
                h = o * jnp.tanh(c)
                outs.append(h)
            seq = jnp.stack(outs, axis=0)
        w_fc = self.w_fc_pad[:, :self.output_dim]
        b_fc = self.b_fc_pad[:, :self.output_dim]
        return seq[-1] @ w_fc + b_fc


if __name__ == "__main__":
    # Small shapes consistent with the module's forward:
    # batch=2, seq=8, input_dim=4, hidden_dim=32, num_layers=2, output_dim=1.
    B, T, D_IN, H, L, O = 2, 8, 4, 32, 2, 1

    root = jax.random.PRNGKey(0)
    k_params, k_x = jax.random.split(root)

    model = StockLSTMPallas(D_IN, H, L, O, k_params)
    x = jax.random.normal(k_x, (B, T, D_IN), jnp.float32)

    out = jax.block_until_ready(model(x))
    assert out.shape == (B, O), out.shape

    ref = jax.block_until_ready(model.reference(x))
    np.testing.assert_allclose(np.asarray(out), np.asarray(ref),
                               rtol=1e-4, atol=1e-4)

    print("KERNEL_OK")
</pallas_src>

<mosaic_0001>
module attributes {stable_mosaic.version = 11 : i64} {
  func.func @kernel(%arg0: memref<64x4xf32, #tpu.memory_space<vmem>>, %arg1: memref<4x128xf32, #tpu.memory_space<vmem>>, %arg2: memref<32x128xf32, #tpu.memory_space<vmem>>, %arg3: memref<1x128xf32, #tpu.memory_space<vmem>>, %arg4: memref<32x128xf32, #tpu.memory_space<vmem>>, %arg5: memref<32x128xf32, #tpu.memory_space<vmem>>, %arg6: memref<1x128xf32, #tpu.memory_space<vmem>>, %arg7: memref<32x128xf32, #tpu.memory_space<vmem>>, %arg8: memref<1x128xf32, #tpu.memory_space<vmem>>, %arg9: memref<8x128xf32, #tpu.memory_space<vmem>>) attributes {dimension_semantics = [], scalar_prefetch = 0 : i64, scratch_operands = 0 : i64, tpu.core_type = #tpu.core_type<tc>} {
    %c0 = arith.constant 0 : index
    %c0_0 = arith.constant 0 : index
    %0 = vector.load %arg0[%c0, %c0_0] : memref<64x4xf32, #tpu.memory_space<vmem>>, vector<64x4xf32>
    %c0_1 = arith.constant 0 : index
    %c0_2 = arith.constant 0 : index
    %1 = vector.load %arg1[%c0_1, %c0_2] : memref<4x128xf32, #tpu.memory_space<vmem>>, vector<4x128xf32>
    %c0_3 = arith.constant 0 : index
    %c0_4 = arith.constant 0 : index
    %2 = vector.load %arg2[%c0_3, %c0_4] : memref<32x128xf32, #tpu.memory_space<vmem>>, vector<32x128xf32>
    %c0_5 = arith.constant 0 : index
    %c0_6 = arith.constant 0 : index
    %3 = vector.load %arg3[%c0_5, %c0_6] : memref<1x128xf32, #tpu.memory_space<vmem>>, vector<1x128xf32>
    %cst = arith.constant dense<0.000000e+00> : vector<64x128xf32>
    %4 = tpu.matmul %0, %1, %cst {dimension_numbers = #tpu.dot_dimension_numbers<[1], [0], [0], [1], [0, 0, 1, 1], [], []>} : vector<64x4xf32>, vector<4x128xf32>, vector<64x128xf32> -> vector<64x128xf32>
    %5 = vector.broadcast %3 : vector<1x128xf32> to vector<64x128xf32>
    %6 = arith.addf %4, %5 : vector<64x128xf32>
    %cst_7 = arith.constant 0.000000e+00 : f32
    %7 = vector.broadcast %cst_7 : f32 to vector<8x32xf32>
    %cst_8 = arith.constant 0.000000e+00 : f32
    %8 = vector.broadcast %cst_8 : f32 to vector<8x32xf32>
    %9 = vector.extract_strided_slice %6 {offsets = [0, 0], sizes = [8, 128], strides = [1, 1]} : vector<64x128xf32> to vector<8x128xf32>
    %cst_9 = arith.constant dense<0.000000e+00> : vector<8x128xf32>
    %10 = tpu.matmul %7, %2, %cst_9 {dimension_numbers = #tpu.dot_dimension_numbers<[1], [0], [0], [1], [0, 0, 1, 1], [], []>} : vector<8x32xf32>, vector<32x128xf32>, vector<8x128xf32> -> vector<8x128xf32>
    %11 = arith.addf %9, %10 : vector<8x128xf32>
    %12 = vector.extract_strided_slice %11 {offsets = [0, 0], sizes = [8, 32], strides = [1, 1]} : vector<8x128xf32> to vector<8x32xf32>
    %13 = arith.negf %12 : vector<8x32xf32>
    %14 = math.exp %13 : vector<8x32xf32>
    %cst_10 = arith.constant 1.000000e+00 : f32
    %15 = vector.broadcast %cst_10 : f32 to vector<8x32xf32>
    %16 = arith.addf %15, %14 : vector<8x32xf32>
    %17 = arith.divf %15, %16 : vector<8x32xf32>
    %18 = vector.extract_strided_slice %11 {offsets = [0, 32], sizes = [8, 32], strides = [1, 1]} : vector<8x128xf32> to vector<8x32xf32>
    %19 = arith.negf %18 : vector<8x32xf32>
    %20 = math.exp %19 : vector<8x32xf32>
    %cst_11 = arith.constant 1.000000e+00 : f32
    %21 = vector.broadcast %cst_11 : f32 to vector<8x32xf32>
    %22 = arith.addf %21, %20 : vector<8x32xf32>
    %23 = arith.divf %21, %22 : vector<8x32xf32>
    %24 = vector.extract_strided_slice %11 {offsets = [0, 64], sizes = [8, 32], strides = [1, 1]} : vector<8x128xf32> to vector<8x32xf32>
    %25 = math.tanh %24 : vector<8x32xf32>
    %26 = vector.extract_strided_slice %11 {offsets = [0, 96], sizes = [8, 32], strides = [1, 1]} : vector<8x128xf32> to vector<8x32xf32>
    %27 = arith.negf %26 : vector<8x32xf32>
    %28 = math.exp %27 : vector<8x32xf32>
    %cst_12 = arith.constant 1.000000e+00 : f32
    %29 = vector.broadcast %cst_12 : f32 to vector<8x32xf32>
    %30 = arith.addf %29, %28 : vector<8x32xf32>
    %31 = arith.divf %29, %30 : vector<8x32xf32>
    %32 = arith.mulf %23, %8 : vector<8x32xf32>
    %33 = arith.mulf %17, %25 : vector<8x32xf32>
    %34 = arith.addf %32, %33 : vector<8x32xf32>
    %35 = math.tanh %34 : vector<8x32xf32>
    %36 = arith.mulf %31, %35 : vector<8x32xf32>
    %37 = vector.extract_strided_slice %6 {offsets = [8, 0], sizes = [8, 128], strides = [1, 1]} : vector<64x128xf32> to vector<8x128xf32>
    %cst_13 = arith.constant dense<0.000000e+00> : vector<8x128xf32>
    %38 = tpu.matmul %36, %2, %cst_13 {dimension_numbers = #tpu.dot_dimension_numbers<[1], [0], [0], [1], [0, 0, 1, 1], [], []>} : vector<8x32xf32>, vector<32x128xf32>, vector<8x128xf32> -> vector<8x128xf32>
    %39 = arith.addf %37, %38 : vector<8x128xf32>
    %40 = vector.extract_strided_slice %39 {offsets = [0, 0], sizes = [8, 32], strides = [1, 1]} : vector<8x128xf32> to vector<8x32xf32>
    %41 = arith.negf %40 : vector<8x32xf32>
    %42 = math.exp %41 : vector<8x32xf32>
    %cst_14 = arith.constant 1.000000e+00 : f32
    %43 = vector.broadcast %cst_14 : f32 to vector<8x32xf32>
    %44 = arith.addf %43, %42 : vector<8x32xf32>
    %45 = arith.divf %43, %44 : vector<8x32xf32>
    %46 = vector.extract_strided_slice %39 {offsets = [0, 32], sizes = [8, 32], strides = [1, 1]} : vector<8x128xf32> to vector<8x32xf32>
    %47 = arith.negf %46 : vector<8x32xf32>
    %48 = math.exp %47 : vector<8x32xf32>
    %cst_15 = arith.constant 1.000000e+00 : f32
    %49 = vector.broadcast %cst_15 : f32 to vector<8x32xf32>
    %50 = arith.addf %49, %48 : vector<8x32xf32>
    %51 = arith.divf %49, %50 : vector<8x32xf32>
    %52 = vector.extract_strided_slice %39 {offsets = [0, 64], sizes = [8, 32], strides = [1, 1]} : vector<8x128xf32> to vector<8x32xf32>
    %53 = math.tanh %52 : vector<8x32xf32>
    %54 = vector.extract_strided_slice %39 {offsets = [0, 96], sizes = [8, 32], strides = [1, 1]} : vector<8x128xf32> to vector<8x32xf32>
    %55 = arith.negf %54 : vector<8x32xf32>
    %56 = math.exp %55 : vector<8x32xf32>
    %cst_16 = arith.constant 1.000000e+00 : f32
    %57 = vector.broadcast %cst_16 : f32 to vector<8x32xf32>
    %58 = arith.addf %57, %56 : vector<8x32xf32>
    %59 = arith.divf %57, %58 : vector<8x32xf32>
    %60 = arith.mulf %51, %34 : vector<8x32xf32>
    %61 = arith.mulf %45, %53 : vector<8x32xf32>
    %62 = arith.addf %60, %61 : vector<8x32xf32>
    %63 = math.tanh %62 : vector<8x32xf32>
    %64 = arith.mulf %59, %63 : vector<8x32xf32>
    %65 = vector.extract_strided_slice %6 {offsets = [16, 0], sizes = [8, 128], strides = [1, 1]} : vector<64x128xf32> to vector<8x128xf32>
    %cst_17 = arith.constant dense<0.000000e+00> : vector<8x128xf32>
    %66 = tpu.matmul %64, %2, %cst_17 {dimension_numbers = #tpu.dot_dimension_numbers<[1], [0], [0], [1], [0, 0, 1, 1], [], []>} : vector<8x32xf32>, vector<32x128xf32>, vector<8x128xf32> -> vector<8x128xf32>
    %67 = arith.addf %65, %66 : vector<8x128xf32>
    %68 = vector.extract_strided_slice %67 {offsets = [0, 0], sizes = [8, 32], strides = [1, 1]} : vector<8x128xf32> to vector<8x32xf32>
    %69 = arith.negf %68 : vector<8x32xf32>
    %70 = math.exp %69 : vector<8x32xf32>
    %cst_18 = arith.constant 1.000000e+00 : f32
    %71 = vector.broadcast %cst_18 : f32 to vector<8x32xf32>
    %72 = arith.addf %71, %70 : vector<8x32xf32>
    %73 = arith.divf %71, %72 : vector<8x32xf32>
    %74 = vector.extract_strided_slice %67 {offsets = [0, 32], sizes = [8, 32], strides = [1, 1]} : vector<8x128xf32> to vector<8x32xf32>
    %75 = arith.negf %74 : vector<8x32xf32>
    %76 = math.exp %75 : vector<8x32xf32>
    %cst_19 = arith.constant 1.000000e+00 : f32
    %77 = vector.broadcast %cst_19 : f32 to vector<8x32xf32>
    %78 = arith.addf %77, %76 : vector<8x32xf32>
    %79 = arith.divf %77, %78 : vector<8x32xf32>
    %80 = vector.extract_strided_slice %67 {offsets = [0, 64], sizes = [8, 32], strides = [1, 1]} : vector<8x128xf32> to vector<8x32xf32>
    %81 = math.tanh %80 : vector<8x32xf32>
    %82 = vector.extract_strided_slice %67 {offsets = [0, 96], sizes = [8, 32], strides = [1, 1]} : vector<8x128xf32> to vector<8x32xf32>
    %83 = arith.negf %82 : vector<8x32xf32>
    %84 = math.exp %83 : vector<8x32xf32>
    %cst_20 = arith.constant 1.000000e+00 : f32
    %85 = vector.broadcast %cst_20 : f32 to vector<8x32xf32>
    %86 = arith.addf %85, %84 : vector<8x32xf32>
    %87 = arith.divf %85, %86 : vector<8x32xf32>
    %88 = arith.mulf %79, %62 : vector<8x32xf32>
    %89 = arith.mulf %73, %81 : vector<8x32xf32>
    %90 = arith.addf %88, %89 : vector<8x32xf32>
    %91 = math.tanh %90 : vector<8x32xf32>
    %92 = arith.mulf %87, %91 : vector<8x32xf32>
    %93 = vector.extract_strided_slice %6 {offsets = [24, 0], sizes = [8, 128], strides = [1, 1]} : vector<64x128xf32> to vector<8x128xf32>
    %cst_21 = arith.constant dense<0.000000e+00> : vector<8x128xf32>
    %94 = tpu.matmul %92, %2, %cst_21 {dimension_numbers = #tpu.dot_dimension_numbers<[1], [0], [0], [1], [0, 0, 1, 1], [], []>} : vector<8x32xf32>, vector<32x128xf32>, vector<8x128xf32> -> vector<8x128xf32>
    %95 = arith.addf %93, %94 : vector<8x128xf32>
    %96 = vector.extract_strided_slice %95 {offsets = [0, 0], sizes = [8, 32], strides = [1, 1]} : vector<8x128xf32> to vector<8x32xf32>
    %97 = arith.negf %96 : vector<8x32xf32>
    %98 = math.exp %97 : vector<8x32xf32>
    %cst_22 = arith.constant 1.000000e+00 : f32
    %99 = vector.broadcast %cst_22 : f32 to vector<8x32xf32>
    %100 = arith.addf %99, %98 : vector<8x32xf32>
    %101 = arith.divf %99, %100 : vector<8x32xf32>
    %102 = vector.extract_strided_slice %95 {offsets = [0, 32], sizes = [8, 32], strides = [1, 1]} : vector<8x128xf32> to vector<8x32xf32>
    %103 = arith.negf %102 : vector<8x32xf32>
    %104 = math.exp %103 : vector<8x32xf32>
    %cst_23 = arith.constant 1.000000e+00 : f32
    %105 = vector.broadcast %cst_23 : f32 to vector<8x32xf32>
    %106 = arith.addf %105, %104 : vector<8x32xf32>
    %107 = arith.divf %105, %106 : vector<8x32xf32>
    %108 = vector.extract_strided_slice %95 {offsets = [0, 64], sizes = [8, 32], strides = [1, 1]} : vector<8x128xf32> to vector<8x32xf32>
    %109 = math.tanh %108 : vector<8x32xf32>
    %110 = vector.extract_strided_slice %95 {offsets = [0, 96], sizes = [8, 32], strides = [1, 1]} : vector<8x128xf32> to vector<8x32xf32>
    %111 = arith.negf %110 : vector<8x32xf32>
    %112 = math.exp %111 : vector<8x32xf32>
    %cst_24 = arith.constant 1.000000e+00 : f32
    %113 = vector.broadcast %cst_24 : f32 to vector<8x32xf32>
    %114 = arith.addf %113, %112 : vector<8x32xf32>
    %115 = arith.divf %113, %114 : vector<8x32xf32>
    %116 = arith.mulf %107, %90 : vector<8x32xf32>
    %117 = arith.mulf %101, %109 : vector<8x32xf32>
    %118 = arith.addf %116, %117 : vector<8x32xf32>
    %119 = math.tanh %118 : vector<8x32xf32>
    %120 = arith.mulf %115, %119 : vector<8x32xf32>
    %121 = vector.extract_strided_slice %6 {offsets = [32, 0], sizes = [8, 128], strides = [1, 1]} : vector<64x128xf32> to vector<8x128xf32>
    %cst_25 = arith.constant dense<0.000000e+00> : vector<8x128xf32>
    %122 = tpu.matmul %120, %2, %cst_25 {dimension_numbers = #tpu.dot_dimension_numbers<[1], [0], [0], [1], [0, 0, 1, 1], [], []>} : vector<8x32xf32>, vector<32x128xf32>, vector<8x128xf32> -> vector<8x128xf32>
    %123 = arith.addf %121, %122 : vector<8x128xf32>
    %124 = vector.extract_strided_slice %123 {offsets = [0, 0], sizes = [8, 32], strides = [1, 1]} : vector<8x128xf32> to vector<8x32xf32>
    %125 = arith.negf %124 : vector<8x32xf32>
    %126 = math.exp %125 : vector<8x32xf32>
    %cst_26 = arith.constant 1.000000e+00 : f32
    %127 = vector.broadcast %cst_26 : f32 to vector<8x32xf32>
    %128 = arith.addf %127, %126 : vector<8x32xf32>
    %129 = arith.divf %127, %128 : vector<8x32xf32>
    %130 = vector.extract_strided_slice %123 {offsets = [0, 32], sizes = [8, 32], strides = [1, 1]} : vector<8x128xf32> to vector<8x32xf32>
    %131 = arith.negf %130 : vector<8x32xf32>
    %132 = math.exp %131 : vector<8x32xf32>
    %cst_27 = arith.constant 1.000000e+00 : f32
    %133 = vector.broadcast %cst_27 : f32 to vector<8x32xf32>
    %134 = arith.addf %133, %132 : vector<8x32xf32>
    %135 = arith.divf %133, %134 : vector<8x32xf32>
    %136 = vector.extract_strided_slice %123 {offsets = [0, 64], sizes = [8, 32], strides = [1, 1]} : vector<8x128xf32> to vector<8x32xf32>
    %137 = math.tanh %136 : vector<8x32xf32>
    %138 = vector.extract_strided_slice %123 {offsets = [0, 96], sizes = [8, 32], strides = [1, 1]} : vector<8x128xf32> to vector<8x32xf32>
    %139 = arith.negf %138 : vector<8x32xf32>
    %140 = math.exp %139 : vector<8x32xf32>
    %cst_28 = arith.constant 1.000000e+00 : f32
    %141 = vector.broadcast %cst_28 : f32 to vector<8x32xf32>
    %142 = arith.addf %141, %140 : vector<8x32xf32>
    %143 = arith.divf %141, %142 : vector<8x32xf32>
    %144 = arith.mulf %135, %118 : vector<8x32xf32>
    %145 = arith.mulf %129, %137 : vector<8x32xf32>
    %146 = arith.addf %144, %145 : vector<8x32xf32>
    %147 = math.tanh %146 : vector<8x32xf32>
    %148 = arith.mulf %143, %147 : vector<8x32xf32>
    %149 = vector.extract_strided_slice %6 {offsets = [40, 0], sizes = [8, 128], strides = [1, 1]} : vector<64x128xf32> to vector<8x128xf32>
    %cst_29 = arith.constant dense<0.000000e+00> : vector<8x128xf32>
    %150 = tpu.matmul %148, %2, %cst_29 {dimension_numbers = #tpu.dot_dimension_numbers<[1], [0], [0], [1], [0, 0, 1, 1], [], []>} : vector<8x32xf32>, vector<32x128xf32>, vector<8x128xf32> -> vector<8x128xf32>
    %151 = arith.addf %149, %150 : vector<8x128xf32>
    %152 = vector.extract_strided_slice %151 {offsets = [0, 0], sizes = [8, 32], strides = [1, 1]} : vector<8x128xf32> to vector<8x32xf32>
    %153 = arith.negf %152 : vector<8x32xf32>
    %154 = math.exp %153 : vector<8x32xf32>
    %cst_30 = arith.constant 1.000000e+00 : f32
    %155 = vector.broadcast %cst_30 : f32 to vector<8x32xf32>
    %156 = arith.addf %155, %154 : vector<8x32xf32>
    %157 = arith.divf %155, %156 : vector<8x32xf32>
    %158 = vector.extract_strided_slice %151 {offsets = [0, 32], sizes = [8, 32], strides = [1, 1]} : vector<8x128xf32> to vector<8x32xf32>
    %159 = arith.negf %158 : vector<8x32xf32>
    %160 = math.exp %159 : vector<8x32xf32>
    %cst_31 = arith.constant 1.000000e+00 : f32
    %161 = vector.broadcast %cst_31 : f32 to vector<8x32xf32>
    %162 = arith.addf %161, %160 : vector<8x32xf32>
    %163 = arith.divf %161, %162 : vector<8x32xf32>
    %164 = vector.extract_strided_slice %151 {offsets = [0, 64], sizes = [8, 32], strides = [1, 1]} : vector<8x128xf32> to vector<8x32xf32>
    %165 = math.tanh %164 : vector<8x32xf32>
    %166 = vector.extract_strided_slice %151 {offsets = [0, 96], sizes = [8, 32], strides = [1, 1]} : vector<8x128xf32> to vector<8x32xf32>
    %167 = arith.negf %166 : vector<8x32xf32>
    %168 = math.exp %167 : vector<8x32xf32>
    %cst_32 = arith.constant 1.000000e+00 : f32
    %169 = vector.broadcast %cst_32 : f32 to vector<8x32xf32>
    %170 = arith.addf %169, %168 : vector<8x32xf32>
    %171 = arith.divf %169, %170 : vector<8x32xf32>
    %172 = arith.mulf %163, %146 : vector<8x32xf32>
    %173 = arith.mulf %157, %165 : vector<8x32xf32>
    %174 = arith.addf %172, %173 : vector<8x32xf32>
    %175 = math.tanh %174 : vector<8x32xf32>
    %176 = arith.mulf %171, %175 : vector<8x32xf32>
    %177 = vector.extract_strided_slice %6 {offsets = [48, 0], sizes = [8, 128], strides = [1, 1]} : vector<64x128xf32> to vector<8x128xf32>
    %cst_33 = arith.constant dense<0.000000e+00> : vector<8x128xf32>
    %178 = tpu.matmul %176, %2, %cst_33 {dimension_numbers = #tpu.dot_dimension_numbers<[1], [0], [0], [1], [0, 0, 1, 1], [], []>} : vector<8x32xf32>, vector<32x128xf32>, vector<8x128xf32> -> vector<8x128xf32>
    %179 = arith.addf %177, %178 : vector<8x128xf32>
    %180 = vector.extract_strided_slice %179 {offsets = [0, 0], sizes = [8, 32], strides = [1, 1]} : vector<8x128xf32> to vector<8x32xf32>
    %181 = arith.negf %180 : vector<8x32xf32>
    %182 = math.exp %181 : vector<8x32xf32>
    %cst_34 = arith.constant 1.000000e+00 : f32
    %183 = vector.broadcast %cst_34 : f32 to vector<8x32xf32>
    %184 = arith.addf %183, %182 : vector<8x32xf32>
    %185 = arith.divf %183, %184 : vector<8x32xf32>
    %186 = vector.extract_strided_slice %179 {offsets = [0, 32], sizes = [8, 32], strides = [1, 1]} : vector<8x128xf32> to vector<8x32xf32>
    %187 = arith.negf %186 : vector<8x32xf32>
    %188 = math.exp %187 : vector<8x32xf32>
    %cst_35 = arith.constant 1.000000e+00 : f32
    %189 = vector.broadcast %cst_35 : f32 to vector<8x32xf32>
    %190 = arith.addf %189, %188 : vector<8x32xf32>
    %191 = arith.divf %189, %190 : vector<8x32xf32>
    %192 = vector.extract_strided_slice %179 {offsets = [0, 64], sizes = [8, 32], strides = [1, 1]} : vector<8x128xf32> to vector<8x32xf32>
    %193 = math.tanh %192 : vector<8x32xf32>
    %194 = vector.extract_strided_slice %179 {offsets = [0, 96], sizes = [8, 32], strides = [1, 1]} : vector<8x128xf32> to vector<8x32xf32>
    %195 = arith.negf %194 : vector<8x32xf32>
    %196 = math.exp %195 : vector<8x32xf32>
    %cst_36 = arith.constant 1.000000e+00 : f32
    %197 = vector.broadcast %cst_36 : f32 to vector<8x32xf32>
    %198 = arith.addf %197, %196 : vector<8x32xf32>
    %199 = arith.divf %197, %198 : vector<8x32xf32>
    %200 = arith.mulf %191, %174 : vector<8x32xf32>
    %201 = arith.mulf %185, %193 : vector<8x32xf32>
    %202 = arith.addf %200, %201 : vector<8x32xf32>
    %203 = math.tanh %202 : vector<8x32xf32>
    %204 = arith.mulf %199, %203 : vector<8x32xf32>
    %205 = vector.extract_strided_slice %6 {offsets = [56, 0], sizes = [8, 128], strides = [1, 1]} : vector<64x128xf32> to vector<8x128xf32>
    %cst_37 = arith.constant dense<0.000000e+00> : vector<8x128xf32>
    %206 = tpu.matmul %204, %2, %cst_37 {dimension_numbers = #tpu.dot_dimension_numbers<[1], [0], [0], [1], [0, 0, 1, 1], [], []>} : vector<8x32xf32>, vector<32x128xf32>, vector<8x128xf32> -> vector<8x128xf32>
    %207 = arith.addf %205, %206 : vector<8x128xf32>
    %208 = vector.extract_strided_slice %207 {offsets = [0, 0], sizes = [8, 32], strides = [1, 1]} : vector<8x128xf32> to vector<8x32xf32>
    %209 = arith.negf %208 : vector<8x32xf32>
    %210 = math.exp %209 : vector<8x32xf32>
    %cst_38 = arith.constant 1.000000e+00 : f32
    %211 = vector.broadcast %cst_38 : f32 to vector<8x32xf32>
    %212 = arith.addf %211, %210 : vector<8x32xf32>
    %213 = arith.divf %211, %212 : vector<8x32xf32>
    %214 = vector.extract_strided_slice %207 {offsets = [0, 32], sizes = [8, 32], strides = [1, 1]} : vector<8x128xf32> to vector<8x32xf32>
    %215 = arith.negf %214 : vector<8x32xf32>
    %216 = math.exp %215 : vector<8x32xf32>
    %cst_39 = arith.constant 1.000000e+00 : f32
    %217 = vector.broadcast %cst_39 : f32 to vector<8x32xf32>
    %218 = arith.addf %217, %216 : vector<8x32xf32>
    %219 = arith.divf %217, %218 : vector<8x32xf32>
    %220 = vector.extract_strided_slice %207 {offsets = [0, 64], sizes = [8, 32], strides = [1, 1]} : vector<8x128xf32> to vector<8x32xf32>
    %221 = math.tanh %220 : vector<8x32xf32>
    %222 = vector.extract_strided_slice %207 {offsets = [0, 96], sizes = [8, 32], strides = [1, 1]} : vector<8x128xf32> to vector<8x32xf32>
    %223 = arith.negf %222 : vector<8x32xf32>
    %224 = math.exp %223 : vector<8x32xf32>
    %cst_40 = arith.constant 1.000000e+00 : f32
    %225 = vector.broadcast %cst_40 : f32 to vector<8x32xf32>
    %226 = arith.addf %225, %224 : vector<8x32xf32>
    %227 = arith.divf %225, %226 : vector<8x32xf32>
    %228 = arith.mulf %219, %202 : vector<8x32xf32>
    %229 = arith.mulf %213, %221 : vector<8x32xf32>
    %230 = arith.addf %228, %229 : vector<8x32xf32>
    %231 = math.tanh %230 : vector<8x32xf32>
    %232 = arith.mulf %227, %231 : vector<8x32xf32>
    %233 = tpu.concatenate %36, %64, %92, %120, %148, %176, %204, %232 in 0 : vector<8x32xf32>, vector<8x32xf32>, vector<8x32xf32>, vector<8x32xf32>, vector<8x32xf32>, vector<8x32xf32>, vector<8x32xf32>, vector<8x32xf32> -> vector<64x32xf32>
    %c0_41 = arith.constant 0 : index
    %c0_42 = arith.constant 0 : index
    %234 = vector.load %arg4[%c0_41, %c0_42] : memref<32x128xf32, #tpu.memory_space<vmem>>, vector<32x128xf32>
    %c0_43 = arith.constant 0 : index
    %c0_44 = arith.constant 0 : index
    %235 = vector.load %arg5[%c0_43, %c0_44] : memref<32x128xf32, #tpu.memory_space<vmem>>, vector<32x128xf32>
    %c0_45 = arith.constant 0 : index
    %c0_46 = arith.constant 0 : index
    %236 = vector.load %arg6[%c0_45, %c0_46] : memref<1x128xf32, #tpu.memory_space<vmem>>, vector<1x128xf32>
    %cst_47 = arith.constant dense<0.000000e+00> : vector<64x128xf32>
    %237 = tpu.matmul %233, %234, %cst_47 {dimension_numbers = #tpu.dot_dimension_numbers<[1], [0], [0], [1], [0, 0, 1, 1], [], []>} : vector<64x32xf32>, vector<32x128xf32>, vector<64x128xf32> -> vector<64x128xf32>
    %238 = vector.broadcast %236 : vector<1x128xf32> to vector<64x128xf32>
    %239 = arith.addf %237, %238 : vector<64x128xf32>
    %cst_48 = arith.constant 0.000000e+00 : f32
    %240 = vector.broadcast %cst_48 : f32 to vector<8x32xf32>
    %cst_49 = arith.constant 0.000000e+00 : f32
    %241 = vector.broadcast %cst_49 : f32 to vector<8x32xf32>
    %242 = vector.extract_strided_slice %239 {offsets = [0, 0], sizes = [8, 128], strides = [1, 1]} : vector<64x128xf32> to vector<8x128xf32>
    %cst_50 = arith.constant dense<0.000000e+00> : vector<8x128xf32>
    %243 = tpu.matmul %240, %235, %cst_50 {dimension_numbers = #tpu.dot_dimension_numbers<[1], [0], [0], [1], [0, 0, 1, 1], [], []>} : vector<8x32xf32>, vector<32x128xf32>, vector<8x128xf32> -> vector<8x128xf32>
    %244 = arith.addf %242, %243 : vector<8x128xf32>
    %245 = vector.extract_strided_slice %244 {offsets = [0, 0], sizes = [8, 32], strides = [1, 1]} : vector<8x128xf32> to vector<8x32xf32>
    %246 = arith.negf %245 : vector<8x32xf32>
    %247 = math.exp %246 : vector<8x32xf32>
    %cst_51 = arith.constant 1.000000e+00 : f32
    %248 = vector.broadcast %cst_51 : f32 to vector<8x32xf32>
    %249 = arith.addf %248, %247 : vector<8x32xf32>
    %250 = arith.divf %248, %249 : vector<8x32xf32>
    %251 = vector.extract_strided_slice %244 {offsets = [0, 32], sizes = [8, 32], strides = [1, 1]} : vector<8x128xf32> to vector<8x32xf32>
    %252 = arith.negf %251 : vector<8x32xf32>
    %253 = math.exp %252 : vector<8x32xf32>
    %cst_52 = arith.constant 1.000000e+00 : f32
    %254 = vector.broadcast %cst_52 : f32 to vector<8x32xf32>
    %255 = arith.addf %254, %253 : vector<8x32xf32>
    %256 = arith.divf %254, %255 : vector<8x32xf32>
    %257 = vector.extract_strided_slice %244 {offsets = [0, 64], sizes = [8, 32], strides = [1, 1]} : vector<8x128xf32> to vector<8x32xf32>
    %258 = math.tanh %257 : vector<8x32xf32>
    %259 = vector.extract_strided_slice %244 {offsets = [0, 96], sizes = [8, 32], strides = [1, 1]} : vector<8x128xf32> to vector<8x32xf32>
    %260 = arith.negf %259 : vector<8x32xf32>
    %261 = math.exp %260 : vector<8x32xf32>
    %cst_53 = arith.constant 1.000000e+00 : f32
    %262 = vector.broadcast %cst_53 : f32 to vector<8x32xf32>
    %263 = arith.addf %262, %261 : vector<8x32xf32>
    %264 = arith.divf %262, %263 : vector<8x32xf32>
    %265 = arith.mulf %256, %241 : vector<8x32xf32>
    %266 = arith.mulf %250, %258 : vector<8x32xf32>
    %267 = arith.addf %265, %266 : vector<8x32xf32>
    %268 = math.tanh %267 : vector<8x32xf32>
    %269 = arith.mulf %264, %268 : vector<8x32xf32>
    %270 = vector.extract_strided_slice %239 {offsets = [8, 0], sizes = [8, 128], strides = [1, 1]} : vector<64x128xf32> to vector<8x128xf32>
    %cst_54 = arith.constant dense<0.000000e+00> : vector<8x128xf32>
    %271 = tpu.matmul %269, %235, %cst_54 {dimension_numbers = #tpu.dot_dimension_numbers<[1], [0], [0], [1], [0, 0, 1, 1], [], []>} : vector<8x32xf32>, vector<32x128xf32>, vector<8x128xf32> -> vector<8x128xf32>
    %272 = arith.addf %270, %271 : vector<8x128xf32>
    %273 = vector.extract_strided_slice %272 {offsets = [0, 0], sizes = [8, 32], strides = [1, 1]} : vector<8x128xf32> to vector<8x32xf32>
    %274 = arith.negf %273 : vector<8x32xf32>
    %275 = math.exp %274 : vector<8x32xf32>
    %cst_55 = arith.constant 1.000000e+00 : f32
    %276 = vector.broadcast %cst_55 : f32 to vector<8x32xf32>
    %277 = arith.addf %276, %275 : vector<8x32xf32>
    %278 = arith.divf %276, %277 : vector<8x32xf32>
    %279 = vector.extract_strided_slice %272 {offsets = [0, 32], sizes = [8, 32], strides = [1, 1]} : vector<8x128xf32> to vector<8x32xf32>
    %280 = arith.negf %279 : vector<8x32xf32>
    %281 = math.exp %280 : vector<8x32xf32>
    %cst_56 = arith.constant 1.000000e+00 : f32
    %282 = vector.broadcast %cst_56 : f32 to vector<8x32xf32>
    %283 = arith.addf %282, %281 : vector<8x32xf32>
    %284 = arith.divf %282, %283 : vector<8x32xf32>
    %285 = vector.extract_strided_slice %272 {offsets = [0, 64], sizes = [8, 32], strides = [1, 1]} : vector<8x128xf32> to vector<8x32xf32>
    %286 = math.tanh %285 : vector<8x32xf32>
    %287 = vector.extract_strided_slice %272 {offsets = [0, 96], sizes = [8, 32], strides = [1, 1]} : vector<8x128xf32> to vector<8x32xf32>
    %288 = arith.negf %287 : vector<8x32xf32>
    %289 = math.exp %288 : vector<8x32xf32>
    %cst_57 = arith.constant 1.000000e+00 : f32
    %290 = vector.broadcast %cst_57 : f32 to vector<8x32xf32>
    %291 = arith.addf %290, %289 : vector<8x32xf32>
    %292 = arith.divf %290, %291 : vector<8x32xf32>
    %293 = arith.mulf %284, %267 : vector<8x32xf32>
    %294 = arith.mulf %278, %286 : vector<8x32xf32>
    %295 = arith.addf %293, %294 : vector<8x32xf32>
    %296 = math.tanh %295 : vector<8x32xf32>
    %297 = arith.mulf %292, %296 : vector<8x32xf32>
    %298 = vector.extract_strided_slice %239 {offsets = [16, 0], sizes = [8, 128], strides = [1, 1]} : vector<64x128xf32> to vector<8x128xf32>
    %cst_58 = arith.constant dense<0.000000e+00> : vector<8x128xf32>
    %299 = tpu.matmul %297, %235, %cst_58 {dimension_numbers = #tpu.dot_dimension_numbers<[1], [0], [0], [1], [0, 0, 1, 1], [], []>} : vector<8x32xf32>, vector<32x128xf32>, vector<8x128xf32> -> vector<8x128xf32>
    %300 = arith.addf %298, %299 : vector<8x128xf32>
    %301 = vector.extract_strided_slice %300 {offsets = [0, 0], sizes = [8, 32], strides = [1, 1]} : vector<8x128xf32> to vector<8x32xf32>
    %302 = arith.negf %301 : vector<8x32xf32>
    %303 = math.exp %302 : vector<8x32xf32>
    %cst_59 = arith.constant 1.000000e+00 : f32
    %304 = vector.broadcast %cst_59 : f32 to vector<8x32xf32>
    %305 = arith.addf %304, %303 : vector<8x32xf32>
    %306 = arith.divf %304, %305 : vector<8x32xf32>
    %307 = vector.extract_strided_slice %300 {offsets = [0, 32], sizes = [8, 32], strides = [1, 1]} : vector<8x128xf32> to vector<8x32xf32>
    %308 = arith.negf %307 : vector<8x32xf32>
    %309 = math.exp %308 : vector<8x32xf32>
    %cst_60 = arith.constant 1.000000e+00 : f32
    %310 = vector.broadcast %cst_60 : f32 to vector<8x32xf32>
    %311 = arith.addf %310, %309 : vector<8x32xf32>
    %312 = arith.divf %310, %311 : vector<8x32xf32>
    %313 = vector.extract_strided_slice %300 {offsets = [0, 64], sizes = [8, 32], strides = [1, 1]} : vector<8x128xf32> to vector<8x32xf32>
    %314 = math.tanh %313 : vector<8x32xf32>
    %315 = vector.extract_strided_slice %300 {offsets = [0, 96], sizes = [8, 32], strides = [1, 1]} : vector<8x128xf32> to vector<8x32xf32>
    %316 = arith.negf %315 : vector<8x32xf32>
    %317 = math.exp %316 : vector<8x32xf32>
    %cst_61 = arith.constant 1.000000e+00 : f32
    %318 = vector.broadcast %cst_61 : f32 to vector<8x32xf32>
    %319 = arith.addf %318, %317 : vector<8x32xf32>
    %320 = arith.divf %318, %319 : vector<8x32xf32>
    %321 = arith.mulf %312, %295 : vector<8x32xf32>
    %322 = arith.mulf %306, %314 : vector<8x32xf32>
    %323 = arith.addf %321, %322 : vector<8x32xf32>
    %324 = math.tanh %323 : vector<8x32xf32>
    %325 = arith.mulf %320, %324 : vector<8x32xf32>
    %326 = vector.extract_strided_slice %239 {offsets = [24, 0], sizes = [8, 128], strides = [1, 1]} : vector<64x128xf32> to vector<8x128xf32>
    %cst_62 = arith.constant dense<0.000000e+00> : vector<8x128xf32>
    %327 = tpu.matmul %325, %235, %cst_62 {dimension_numbers = #tpu.dot_dimension_numbers<[1], [0], [0], [1], [0, 0, 1, 1], [], []>} : vector<8x32xf32>, vector<32x128xf32>, vector<8x128xf32> -> vector<8x128xf32>
    %328 = arith.addf %326, %327 : vector<8x128xf32>
    %329 = vector.extract_strided_slice %328 {offsets = [0, 0], sizes = [8, 32], strides = [1, 1]} : vector<8x128xf32> to vector<8x32xf32>
    %330 = arith.negf %329 : vector<8x32xf32>
    %331 = math.exp %330 : vector<8x32xf32>
    %cst_63 = arith.constant 1.000000e+00 : f32
    %332 = vector.broadcast %cst_63 : f32 to vector<8x32xf32>
    %333 = arith.addf %332, %331 : vector<8x32xf32>
    %334 = arith.divf %332, %333 : vector<8x32xf32>
    %335 = vector.extract_strided_slice %328 {offsets = [0, 32], sizes = [8, 32], strides = [1, 1]} : vector<8x128xf32> to vector<8x32xf32>
    %336 = arith.negf %335 : vector<8x32xf32>
    %337 = math.exp %336 : vector<8x32xf32>
    %cst_64 = arith.constant 1.000000e+00 : f32
    %338 = vector.broadcast %cst_64 : f32 to vector<8x32xf32>
    %339 = arith.addf %338, %337 : vector<8x32xf32>
    %340 = arith.divf %338, %339 : vector<8x32xf32>
    %341 = vector.extract_strided_slice %328 {offsets = [0, 64], sizes = [8, 32], strides = [1, 1]} : vector<8x128xf32> to vector<8x32xf32>
    %342 = math.tanh %341 : vector<8x32xf32>
    %343 = vector.extract_strided_slice %328 {offsets = [0, 96], sizes = [8, 32], strides = [1, 1]} : vector<8x128xf32> to vector<8x32xf32>
    %344 = arith.negf %343 : vector<8x32xf32>
    %345 = math.exp %344 : vector<8x32xf32>
    %cst_65 = arith.constant 1.000000e+00 : f32
    %346 = vector.broadcast %cst_65 : f32 to vector<8x32xf32>
    %347 = arith.addf %346, %345 : vector<8x32xf32>
    %348 = arith.divf %346, %347 : vector<8x32xf32>
    %349 = arith.mulf %340, %323 : vector<8x32xf32>
    %350 = arith.mulf %334, %342 : vector<8x32xf32>
    %351 = arith.addf %349, %350 : vector<8x32xf32>
    %352 = math.tanh %351 : vector<8x32xf32>
    %353 = arith.mulf %348, %352 : vector<8x32xf32>
    %354 = vector.extract_strided_slice %239 {offsets = [32, 0], sizes = [8, 128], strides = [1, 1]} : vector<64x128xf32> to vector<8x128xf32>
    %cst_66 = arith.constant dense<0.000000e+00> : vector<8x128xf32>
    %355 = tpu.matmul %353, %235, %cst_66 {dimension_numbers = #tpu.dot_dimension_numbers<[1], [0], [0], [1], [0, 0, 1, 1], [], []>} : vector<8x32xf32>, vector<32x128xf32>, vector<8x128xf32> -> vector<8x128xf32>
    %356 = arith.addf %354, %355 : vector<8x128xf32>
    %357 = vector.extract_strided_slice %356 {offsets = [0, 0], sizes = [8, 32], strides = [1, 1]} : vector<8x128xf32> to vector<8x32xf32>
    %358 = arith.negf %357 : vector<8x32xf32>
    %359 = math.exp %358 : vector<8x32xf32>
    %cst_67 = arith.constant 1.000000e+00 : f32
    %360 = vector.broadcast %cst_67 : f32 to vector<8x32xf32>
    %361 = arith.addf %360, %359 : vector<8x32xf32>
    %362 = arith.divf %360, %361 : vector<8x32xf32>
    %363 = vector.extract_strided_slice %356 {offsets = [0, 32], sizes = [8, 32], strides = [1, 1]} : vector<8x128xf32> to vector<8x32xf32>
    %364 = arith.negf %363 : vector<8x32xf32>
    %365 = math.exp %364 : vector<8x32xf32>
    %cst_68 = arith.constant 1.000000e+00 : f32
    %366 = vector.broadcast %cst_68 : f32 to vector<8x32xf32>
    %367 = arith.addf %366, %365 : vector<8x32xf32>
    %368 = arith.divf %366, %367 : vector<8x32xf32>
    %369 = vector.extract_strided_slice %356 {offsets = [0, 64], sizes = [8, 32], strides = [1, 1]} : vector<8x128xf32> to vector<8x32xf32>
    %370 = math.tanh %369 : vector<8x32xf32>
    %371 = vector.extract_strided_slice %356 {offsets = [0, 96], sizes = [8, 32], strides = [1, 1]} : vector<8x128xf32> to vector<8x32xf32>
    %372 = arith.negf %371 : vector<8x32xf32>
    %373 = math.exp %372 : vector<8x32xf32>
    %cst_69 = arith.constant 1.000000e+00 : f32
    %374 = vector.broadcast %cst_69 : f32 to vector<8x32xf32>
    %375 = arith.addf %374, %373 : vector<8x32xf32>
    %376 = arith.divf %374, %375 : vector<8x32xf32>
    %377 = arith.mulf %368, %351 : vector<8x32xf32>
    %378 = arith.mulf %362, %370 : vector<8x32xf32>
    %379 = arith.addf %377, %378 : vector<8x32xf32>
    %380 = math.tanh %379 : vector<8x32xf32>
    %381 = arith.mulf %376, %380 : vector<8x32xf32>
    %382 = vector.extract_strided_slice %239 {offsets = [40, 0], sizes = [8, 128], strides = [1, 1]} : vector<64x128xf32> to vector<8x128xf32>
    %cst_70 = arith.constant dense<0.000000e+00> : vector<8x128xf32>
    %383 = tpu.matmul %381, %235, %cst_70 {dimension_numbers = #tpu.dot_dimension_numbers<[1], [0], [0], [1], [0, 0, 1, 1], [], []>} : vector<8x32xf32>, vector<32x128xf32>, vector<8x128xf32> -> vector<8x128xf32>
    %384 = arith.addf %382, %383 : vector<8x128xf32>
    %385 = vector.extract_strided_slice %384 {offsets = [0, 0], sizes = [8, 32], strides = [1, 1]} : vector<8x128xf32> to vector<8x32xf32>
    %386 = arith.negf %385 : vector<8x32xf32>
    %387 = math.exp %386 : vector<8x32xf32>
    %cst_71 = arith.constant 1.000000e+00 : f32
    %388 = vector.broadcast %cst_71 : f32 to vector<8x32xf32>
    %389 = arith.addf %388, %387 : vector<8x32xf32>
    %390 = arith.divf %388, %389 : vector<8x32xf32>
    %391 = vector.extract_strided_slice %384 {offsets = [0, 32], sizes = [8, 32], strides = [1, 1]} : vector<8x128xf32> to vector<8x32xf32>
    %392 = arith.negf %391 : vector<8x32xf32>
    %393 = math.exp %392 : vector<8x32xf32>
    %cst_72 = arith.constant 1.000000e+00 : f32
    %394 = vector.broadcast %cst_72 : f32 to vector<8x32xf32>
    %395 = arith.addf %394, %393 : vector<8x32xf32>
    %396 = arith.divf %394, %395 : vector<8x32xf32>
    %397 = vector.extract_strided_slice %384 {offsets = [0, 64], sizes = [8, 32], strides = [1, 1]} : vector<8x128xf32> to vector<8x32xf32>
    %398 = math.tanh %397 : vector<8x32xf32>
    %399 = vector.extract_strided_slice %384 {offsets = [0, 96], sizes = [8, 32], strides = [1, 1]} : vector<8x128xf32> to vector<8x32xf32>
    %400 = arith.negf %399 : vector<8x32xf32>
    %401 = math.exp %400 : vector<8x32xf32>
    %cst_73 = arith.constant 1.000000e+00 : f32
    %402 = vector.broadcast %cst_73 : f32 to vector<8x32xf32>
    %403 = arith.addf %402, %401 : vector<8x32xf32>
    %404 = arith.divf %402, %403 : vector<8x32xf32>
    %405 = arith.mulf %396, %379 : vector<8x32xf32>
    %406 = arith.mulf %390, %398 : vector<8x32xf32>
    %407 = arith.addf %405, %406 : vector<8x32xf32>
    %408 = math.tanh %407 : vector<8x32xf32>
    %409 = arith.mulf %404, %408 : vector<8x32xf32>
    %410 = vector.extract_strided_slice %239 {offsets = [48, 0], sizes = [8, 128], strides = [1, 1]} : vector<64x128xf32> to vector<8x128xf32>
    %cst_74 = arith.constant dense<0.000000e+00> : vector<8x128xf32>
    %411 = tpu.matmul %409, %235, %cst_74 {dimension_numbers = #tpu.dot_dimension_numbers<[1], [0], [0], [1], [0, 0, 1, 1], [], []>} : vector<8x32xf32>, vector<32x128xf32>, vector<8x128xf32> -> vector<8x128xf32>
    %412 = arith.addf %410, %411 : vector<8x128xf32>
    %413 = vector.extract_strided_slice %412 {offsets = [0, 0], sizes = [8, 32], strides = [1, 1]} : vector<8x128xf32> to vector<8x32xf32>
    %414 = arith.negf %413 : vector<8x32xf32>
    %415 = math.exp %414 : vector<8x32xf32>
    %cst_75 = arith.constant 1.000000e+00 : f32
    %416 = vector.broadcast %cst_75 : f32 to vector<8x32xf32>
    %417 = arith.addf %416, %415 : vector<8x32xf32>
    %418 = arith.divf %416, %417 : vector<8x32xf32>
    %419 = vector.extract_strided_slice %412 {offsets = [0, 32], sizes = [8, 32], strides = [1, 1]} : vector<8x128xf32> to vector<8x32xf32>
    %420 = arith.negf %419 : vector<8x32xf32>
    %421 = math.exp %420 : vector<8x32xf32>
    %cst_76 = arith.constant 1.000000e+00 : f32
    %422 = vector.broadcast %cst_76 : f32 to vector<8x32xf32>
    %423 = arith.addf %422, %421 : vector<8x32xf32>
    %424 = arith.divf %422, %423 : vector<8x32xf32>
    %425 = vector.extract_strided_slice %412 {offsets = [0, 64], sizes = [8, 32], strides = [1, 1]} : vector<8x128xf32> to vector<8x32xf32>
    %426 = math.tanh %425 : vector<8x32xf32>
    %427 = vector.extract_strided_slice %412 {offsets = [0, 96], sizes = [8, 32], strides = [1, 1]} : vector<8x128xf32> to vector<8x32xf32>
    %428 = arith.negf %427 : vector<8x32xf32>
    %429 = math.exp %428 : vector<8x32xf32>
    %cst_77 = arith.constant 1.000000e+00 : f32
    %430 = vector.broadcast %cst_77 : f32 to vector<8x32xf32>
    %431 = arith.addf %430, %429 : vector<8x32xf32>
    %432 = arith.divf %430, %431 : vector<8x32xf32>
    %433 = arith.mulf %424, %407 : vector<8x32xf32>
    %434 = arith.mulf %418, %426 : vector<8x32xf32>
    %435 = arith.addf %433, %434 : vector<8x32xf32>
    %436 = math.tanh %435 : vector<8x32xf32>
    %437 = arith.mulf %432, %436 : vector<8x32xf32>
    %438 = vector.extract_strided_slice %239 {offsets = [56, 0], sizes = [8, 128], strides = [1, 1]} : vector<64x128xf32> to vector<8x128xf32>
    %cst_78 = arith.constant dense<0.000000e+00> : vector<8x128xf32>
    %439 = tpu.matmul %437, %235, %cst_78 {dimension_numbers = #tpu.dot_dimension_numbers<[1], [0], [0], [1], [0, 0, 1, 1], [], []>} : vector<8x32xf32>, vector<32x128xf32>, vector<8x128xf32> -> vector<8x128xf32>
    %440 = arith.addf %438, %439 : vector<8x128xf32>
    %441 = vector.extract_strided_slice %440 {offsets = [0, 0], sizes = [8, 32], strides = [1, 1]} : vector<8x128xf32> to vector<8x32xf32>
    %442 = arith.negf %441 : vector<8x32xf32>
    %443 = math.exp %442 : vector<8x32xf32>
    %cst_79 = arith.constant 1.000000e+00 : f32
    %444 = vector.broadcast %cst_79 : f32 to vector<8x32xf32>
    %445 = arith.addf %444, %443 : vector<8x32xf32>
    %446 = arith.divf %444, %445 : vector<8x32xf32>
    %447 = vector.extract_strided_slice %440 {offsets = [0, 32], sizes = [8, 32], strides = [1, 1]} : vector<8x128xf32> to vector<8x32xf32>
    %448 = arith.negf %447 : vector<8x32xf32>
    %449 = math.exp %448 : vector<8x32xf32>
    %cst_80 = arith.constant 1.000000e+00 : f32
    %450 = vector.broadcast %cst_80 : f32 to vector<8x32xf32>
    %451 = arith.addf %450, %449 : vector<8x32xf32>
    %452 = arith.divf %450, %451 : vector<8x32xf32>
    %453 = vector.extract_strided_slice %440 {offsets = [0, 64], sizes = [8, 32], strides = [1, 1]} : vector<8x128xf32> to vector<8x32xf32>
    %454 = math.tanh %453 : vector<8x32xf32>
    %455 = vector.extract_strided_slice %440 {offsets = [0, 96], sizes = [8, 32], strides = [1, 1]} : vector<8x128xf32> to vector<8x32xf32>
    %456 = arith.negf %455 : vector<8x32xf32>
    %457 = math.exp %456 : vector<8x32xf32>
    %cst_81 = arith.constant 1.000000e+00 : f32
    %458 = vector.broadcast %cst_81 : f32 to vector<8x32xf32>
    %459 = arith.addf %458, %457 : vector<8x32xf32>
    %460 = arith.divf %458, %459 : vector<8x32xf32>
    %461 = arith.mulf %452, %435 : vector<8x32xf32>
    %462 = arith.mulf %446, %454 : vector<8x32xf32>
    %463 = arith.addf %461, %462 : vector<8x32xf32>
    %464 = math.tanh %463 : vector<8x32xf32>
    %465 = arith.mulf %460, %464 : vector<8x32xf32>
    %c0_82 = arith.constant 0 : index
    %c0_83 = arith.constant 0 : index
    %466 = vector.load %arg7[%c0_82, %c0_83] : memref<32x128xf32, #tpu.memory_space<vmem>>, vector<32x128xf32>
    %cst_84 = arith.constant dense<0.000000e+00> : vector<8x128xf32>
    %467 = tpu.matmul %465, %466, %cst_84 {dimension_numbers = #tpu.dot_dimension_numbers<[1], [0], [0], [1], [0, 0, 1, 1], [], []>} : vector<8x32xf32>, vector<32x128xf32>, vector<8x128xf32> -> vector<8x128xf32>
    %c0_85 = arith.constant 0 : index
    %c0_86 = arith.constant 0 : index
    %468 = vector.load %arg8[%c0_85, %c0_86] : memref<1x128xf32, #tpu.memory_space<vmem>>, vector<1x128xf32>
    %469 = vector.broadcast %468 : vector<1x128xf32> to vector<8x128xf32>
    %470 = arith.addf %467, %469 : vector<8x128xf32>
    %c0_87 = arith.constant 0 : index
    %c0_88 = arith.constant 0 : index
    %471 = vector.load %arg9[%c0_87, %c0_88] : memref<8x128xf32, #tpu.memory_space<vmem>>, vector<8x128xf32>
    tpu.vector_store %arg9[%c0_87, %c0_88], %470 {strides = array<i32>} : memref<8x128xf32, #tpu.memory_space<vmem>>, vector<8x128xf32>,
    return
  }
}

</mosaic_0001>

<llo_original>
// kernel: fwd.1
$region0: #{fwd.1}
  #allocation0 [shape = 'u32[]', space=smem, size = 0x4, offset = 0x4, fixed_abs, tag = 'smem constant byte address 0x4 - core index']
  #allocation1 [shape = 'u32[144,128]{1,0:T(1,128)}', space=vmem, size = 0x12000, scoped, tag = 'internal scratch']
  %s0 = inlined_call_operand.vmem [shape: f32[64,4], index: 0, kind: input, shape index: {}]
  %s1 = inlined_call_operand.vmem [shape: f32[4,128], index: 1, kind: input, shape index: {}]
  %s2 = inlined_call_operand.vmem [shape: f32[32,128], index: 2, kind: input, shape index: {}]
  %s3 = inlined_call_operand.vmem [shape: f32[1,128], index: 3, kind: input, shape index: {}]
  %s4 = inlined_call_operand.vmem [shape: f32[32,128], index: 4, kind: input, shape index: {}]
  %s5 = inlined_call_operand.vmem [shape: f32[32,128], index: 5, kind: input, shape index: {}]
  %s6 = inlined_call_operand.vmem [shape: f32[1,128], index: 6, kind: input, shape index: {}]
  %s7 = inlined_call_operand.vmem [shape: f32[32,128], index: 7, kind: input, shape index: {}]
  %s8 = inlined_call_operand.vmem [shape: f32[1,128], index: 8, kind: input, shape index: {}]
  %s9 = inlined_call_operand.vmem [shape: f32[8,128], index: 9, kind: output, shape index: {}]
  %s10 = sld [smem:[#allocation0]]
  $region46: #{fwd.1} parent=0
    _
  %s12 = ssub.s32 1, %s10
  %s13 = scalar_select 0, %s12, %s10
  // Predicated region
  $region2: #{fwd.1} parent=0 // pred_check
    _
  $region3: #{fwd.1} parent=0 // pred_check_branch
    %15 = sbr.rel (0) target = $region5
  $region4: #{fwd.1} parent=0 // pred_region
    _
  $region5: #{fwd.1} parent=0 // pred_fallthru
    _
  // Predicated region
  $region6: #{fwd.1} parent=0 // pred_check
    _
  $region7: #{fwd.1} parent=0 // pred_check_branch
    %17 = sbr.rel (0) target = $region9
  $region8: #{fwd.1} parent=0 // pred_region
    _
  $region9: #{fwd.1} parent=0 // pred_fallthru
    _
  // Predicated region
  $region10: #{fwd.1} parent=0 // pred_check
    _
  $region11: #{fwd.1} parent=0 // pred_check_branch
    %19 = sbr.rel (0) target = $region13
  $region12: #{fwd.1} parent=0 // pred_region
    _
  $region13: #{fwd.1} parent=0 // pred_fallthru
    _
  // Predicated region
  $region14: #{fwd.1} parent=0 // pred_check
    _
  $region15: #{fwd.1} parent=0 // pred_check_branch
    %21 = sbr.rel (0) target = $region17
  $region16: #{fwd.1} parent=0 // pred_region
    _
  $region17: #{fwd.1} parent=0 // pred_fallthru
    _
  // Predicated region
  $region18: #{fwd.1} parent=0 // pred_check
    _
  $region19: #{fwd.1} parent=0 // pred_check_branch
    %23 = sbr.rel (0) target = $region21
  $region20: #{fwd.1} parent=0 // pred_region
    _
  $region21: #{fwd.1} parent=0 // pred_fallthru
    _
  // Predicated region
  $region22: #{fwd.1} parent=0 // pred_check
    _
  $region23: #{fwd.1} parent=0 // pred_check_branch
    %25 = sbr.rel (0) target = $region25
  $region24: #{fwd.1} parent=0 // pred_region
    _
  $region25: #{fwd.1} parent=0 // pred_fallthru
    _
  // Predicated region
  $region26: #{fwd.1} parent=0 // pred_check
    _
  $region27: #{fwd.1} parent=0 // pred_check_branch
    %27 = sbr.rel (0) target = $region29
  $region28: #{fwd.1} parent=0 // pred_region
    _
  $region29: #{fwd.1} parent=0 // pred_fallthru
    _
  // Predicated region
  $region30: #{fwd.1} parent=0 // pred_check
    _
  $region31: #{fwd.1} parent=0 // pred_check_branch
    %29 = sbr.rel (0) target = $region33
  $region32: #{fwd.1} parent=0 // pred_region
    _
  $region33: #{fwd.1} parent=0 // pred_fallthru
    _
  // Predicated region
  $region34: #{fwd.1} parent=0 // pred_check
    _
  $region35: #{fwd.1} parent=0 // pred_check_branch
    %31 = sbr.rel (0) target = $region37
  $region36: #{fwd.1} parent=0 // pred_region
    _
  $region37: #{fwd.1} parent=0 // pred_fallthru
    _
  %v32 = vld [vmem:[%s0] sm:$0xff]
  %v33 = vld [vmem:[%s0 + $0x8] sm:$0xff]
  %v34 = vld [vmem:[%s0 + $0x10] sm:$0xff]
  %v35 = vld [vmem:[%s0 + $0x18] sm:$0xff]
  %v36 = vld [vmem:[%s0 + $0x20] sm:$0xff]
  %v37 = vld [vmem:[%s0 + $0x28] sm:$0xff]
  %v38 = vld [vmem:[%s0 + $0x30] sm:$0xff]
  %v39 = vld [vmem:[%s0 + $0x38] sm:$0xff]
  %v40 = vld [vmem:[%s1] sm:$0xf]
  %v41 = vld [vmem:[%s2] sm:$0xff]
  %v42 = vld [vmem:[%s2 + $0x8] sm:$0xff]
  %v43 = vld [vmem:[%s2 + $0x10] sm:$0xff]
  %v44 = vld [vmem:[%s2 + $0x18] sm:$0xff]
  %v45 = vld [vmem:[%s3] sm:$0x1]
  %v47 = vlaneseq
  %v48 = vshrl.u32 %v47, 7
  %v49 = vsub.s32 0, %v48
  %v50 = vrot.slane %v45, %v49
  %vm52 = vcmask 31744
  %v54 = vsel %vm52, %v32, 0
  %v57 = vsel %vm52, %v33, 0
  %v60 = vsel %vm52, %v34, 0
  %v63 = vsel %vm52, %v35, 0
  %v66 = vsel %vm52, %v36, 0
  %v69 = vsel %vm52, %v37, 0
  %v72 = vsel %vm52, %v38, 0
  %v75 = vsel %vm52, %v39, 0
  %vm77 = vcmask 1043456
  %v79 = vsel %vm77, %v40, 0
  %81 = vmatprep.subr.mxu0 0.0
  %82 = vmatpush1.msra.mxu0 0.0
  %83 = vmatprep.subr.mxu0 0.0
  %84 = vmatpush1.msra.mxu0 0.0
  %85 = vmatprep.subr.mxu0 0.0
  %86 = vmatpush1.msra.mxu0 0.0
  %87 = vmatprep.subr.mxu0 0.0
  %88 = vmatpush1.msra.mxu0 0.0
  %89 = vmatprep.subr.mxu0 0.0
  %90 = vmatpush1.msra.mxu0 0.0
  %91 = vmatprep.subr.mxu0 0.0
  %92 = vmatpush1.msra.mxu0 0.0
  %93 = vmatprep.subr.mxu0 0.0
  %94 = vmatpush1.msra.mxu0 0.0
  %95 = vmatprep.subr.mxu0 0.0
  %96 = vmatpush1.msra.mxu0 0.0
  %97 = vmatprep.subr.mxu0 0.0
  %98 = vmatpush1.msra.mxu0 0.0
  %99 = vmatprep.subr.mxu0 0.0
  %100 = vmatpush1.msra.mxu0 0.0
  %101 = vmatprep.subr.mxu0 0.0
  %102 = vmatpush1.msra.mxu0 0.0
  %103 = vmatprep.subr.mxu0 0.0
  %104 = vmatpush1.msra.mxu0 0.0
  %105 = vmatprep.subr.mxu0 0.0
  %106 = vmatpush1.msra.mxu0 0.0
  %107 = vmatprep.subr.mxu0 0.0
  %108 = vmatpush1.msra.mxu0 0.0
  %109 = vmatprep.subr.mxu0 0.0
  %110 = vmatpush1.msra.mxu0 0.0
  %111 = vmatprep.subr.mxu0 0.0
  %112 = vmatpush1.msra.mxu0 %v79
  %113 = vmatprep.subr.mxu0 0.0
  %114 = vmatpush2.msra.mxu0 0.0
  %115 = vmatprep.subr.mxu0 0.0
  %116 = vmatpush2.msra.mxu0 0.0
  %117 = vmatprep.subr.mxu0 0.0
  %118 = vmatpush2.msra.mxu0 0.0
  %119 = vmatprep.subr.mxu0 0.0
  %120 = vmatpush2.msra.mxu0 0.0
  %121 = vmatprep.subr.mxu0 0.0
  %122 = vmatpush2.msra.mxu0 0.0
  %123 = vmatprep.subr.mxu0 0.0
  %124 = vmatpush2.msra.mxu0 0.0
  %125 = vmatprep.subr.mxu0 0.0
  %126 = vmatpush2.msra.mxu0 0.0
  %127 = vmatprep.subr.mxu0 0.0
  %128 = vmatpush2.msra.mxu0 0.0
  %129 = vmatprep.subr.mxu0 0.0
  %130 = vmatpush2.msra.mxu0 0.0
  %131 = vmatprep.subr.mxu0 0.0
  %132 = vmatpush2.msra.mxu0 0.0
  %133 = vmatprep.subr.mxu0 0.0
  %134 = vmatpush2.msra.mxu0 0.0
  %135 = vmatprep.subr.mxu0 0.0
  %136 = vmatpush2.msra.mxu0 0.0
  %137 = vmatprep.subr.mxu0 0.0
  %138 = vmatpush2.msra.mxu0 0.0
  %139 = vmatprep.subr.mxu0 0.0
  %140 = vmatpush2.msra.mxu0 0.0
  %141 = vmatprep.subr.mxu0 0.0
  %142 = vmatpush2.msra.mxu0 0.0
  %143 = vmatprep.subr.mxu0 0.0
  %144 = vmatpush2.msra.mxu0 0.0
  %145 = vmatprep.mubr.f32.mxu0 0.0
  %146 = vmatmul.mubr.f32.gmra.mxu0 %v54
  %v147 = vpop.f32.mrf.mxu0
  %v148 = vadd.f32 %v50, %v147
  %v149 = vpop.f32.mrf.mxu0
  %150 = vmatprep.mubr.f32.mxu0 0.0
  %151 = vmatmul.mubr.f32.gmra.mxu0 %v57
  %v152 = vpop.f32.mrf.mxu0
  %v153 = vadd.f32 %v50, %v152
  %v154 = vpop.f32.mrf.mxu0
  %155 = vmatprep.mubr.f32.mxu0 0.0
  %156 = vmatmul.mubr.f32.gmra.mxu0 %v60
  %v157 = vpop.f32.mrf.mxu0
  %v158 = vadd.f32 %v50, %v157
  %v159 = vpop.f32.mrf.mxu0
  %160 = vmatprep.mubr.f32.mxu0 0.0
  %161 = vmatmul.mubr.f32.gmra.mxu0 %v63
  %v162 = vpop.f32.mrf.mxu0
  %v163 = vadd.f32 %v50, %v162
  %v164 = vpop.f32.mrf.mxu0
  %165 = vmatprep.mubr.f32.mxu0 0.0
  %166 = vmatmul.mubr.f32.gmra.mxu0 %v66
  %v167 = vpop.f32.mrf.mxu0
  %v168 = vadd.f32 %v50, %v167
  %v169 = vpop.f32.mrf.mxu0
  %170 = vmatprep.mubr.f32.mxu0 0.0
  %171 = vmatmul.mubr.f32.gmra.mxu0 %v69
  %v172 = vpop.f32.mrf.mxu0
  %v173 = vadd.f32 %v50, %v172
  %v174 = vpop.f32.mrf.mxu0
  %175 = vmatprep.mubr.f32.mxu0 0.0
  %176 = vmatmul.mubr.f32.gmra.mxu0 %v72
  %v177 = vpop.f32.mrf.mxu0
  %v178 = vadd.f32 %v50, %v177
  %v179 = vpop.f32.mrf.mxu0
  %180 = vmatprep.mubr.f32.mxu0 0.0
  %181 = vmatmul.mubr.f32.gmra.mxu0 %v75
  %v182 = vpop.f32.mrf.mxu0
  %v183 = vadd.f32 %v50, %v182
  %v184 = vpop.f32.mrf.mxu0
  %185 = vdwg.mxu0
  %vm186 = vcmask 261120
  %v188 = vsel %vm186, 0.0, 0
  %190 = vmatprep.subr.mxu0 0.0
  %191 = vmatpush1.msra.mxu0 0.0
  %192 = vmatprep.subr.mxu0 0.0
  %193 = vmatpush1.msra.mxu0 0.0
  %194 = vmatprep.subr.mxu0 0.0
  %195 = vmatpush1.msra.mxu0 0.0
  %196 = vmatprep.subr.mxu0 0.0
  %197 = vmatpush1.msra.mxu0 0.0
  %198 = vmatprep.subr.mxu0 0.0
  %199 = vmatpush1.msra.mxu0 0.0
  %200 = vmatprep.subr.mxu0 0.0
  %201 = vmatpush1.msra.mxu0 0.0
  %202 = vmatprep.subr.mxu0 0.0
  %203 = vmatpush1.msra.mxu0 0.0
  %204 = vmatprep.subr.mxu0 0.0
  %205 = vmatpush1.msra.mxu0 0.0
  %206 = vmatprep.subr.mxu0 0.0
  %207 = vmatpush1.msra.mxu0 0.0
  %208 = vmatprep.subr.mxu0 0.0
  %209 = vmatpush1.msra.mxu0 0.0
  %210 = vmatprep.subr.mxu0 0.0
  %211 = vmatpush1.msra.mxu0 0.0
  %212 = vmatprep.subr.mxu0 0.0
  %213 = vmatpush1.msra.mxu0 0.0
  %214 = vmatprep.subr.mxu0 0.0
  %215 = vmatpush1.msra.mxu0 %v44
  %216 = vmatprep.subr.mxu0 0.0
  %217 = vmatpush1.msra.mxu0 %v43
  %218 = vmatprep.subr.mxu0 0.0
  %219 = vmatpush1.msra.mxu0 %v42
  %220 = vmatprep.subr.mxu0 0.0
  %221 = vmatpush1.msra.mxu0 %v41
  %222 = vmatprep.subr.mxu0 0.0
  %223 = vmatpush2.msra.mxu0 0.0
  %224 = vmatprep.subr.mxu0 0.0
  %225 = vmatpush2.msra.mxu0 0.0
  %226 = vmatprep.subr.mxu0 0.0
  %227 = vmatpush2.msra.mxu0 0.0
  %228 = vmatprep.subr.mxu0 0.0
  %229 = vmatpush2.msra.mxu0 0.0
  %230 = vmatprep.subr.mxu0 0.0
  %231 = vmatpush2.msra.mxu0 0.0
  %232 = vmatprep.subr.mxu0 0.0
  %233 = vmatpush2.msra.mxu0 0.0
  %234 = vmatprep.subr.mxu0 0.0
  %235 = vmatpush2.msra.mxu0 0.0
  %236 = vmatprep.subr.mxu0 0.0
  %237 = vmatpush2.msra.mxu0 0.0
  %238 = vmatprep.subr.mxu0 0.0
  %239 = vmatpush2.msra.mxu0 0.0
  %240 = vmatprep.subr.mxu0 0.0
  %241 = vmatpush2.msra.mxu0 0.0
  %242 = vmatprep.subr.mxu0 0.0
  %243 = vmatpush2.msra.mxu0 0.0
  %244 = vmatprep.subr.mxu0 0.0
  %245 = vmatpush2.msra.mxu0 0.0
  %246 = vmatprep.subr.mxu0 0.0
  %247 = vmatpush2.msra.mxu0 0.0
  %248 = vmatprep.subr.mxu0 0.0
  %249 = vmatpush2.msra.mxu0 0.0
  %250 = vmatprep.subr.mxu0 0.0
  %251 = vmatpush2.msra.mxu0 0.0
  %252 = vmatprep.subr.mxu0 0.0
  %253 = vmatpush2.msra.mxu0 0.0
  %254 = vmatprep.mubr.f32.mxu0 0.0
  %255 = vmatmul.mubr.f32.gmra.mxu0 %v188
  %v256 = vpop.f32.mrf.mxu0
  %v257 = vadd.f32 0.0, %v256
  %v258 = vpop.f32.mrf.mxu0
  %259 = vdwg.mxu0
  %v260 = vadd.f32 %v148, %v257
  %v261 = vxor.u32 %v260, 2147483648
  %v262 = vmul.f32 %v261, 1.442695
  %v263 = vpow.pop %v262
  %v264 = vadd.f32 %v263, 1.0
  %v265 = vrcp.pop %v264
  %v266 = vmul.f32 1.0, %v265
  %v267 = vtanh.pop %v260
  %v268 = vmul.f32 %v266, 0.0
  %270 = vrot.lane.b32.xlu0 %v267, 64
  %v271 = vpop.permute.xlu0 %270
  %v273 = vmul.f32 %v266, %v271
  %275 = vrot.lane.b32.xlu0 %v273, 32
  %v276 = vpop.permute.xlu0 %275
  %v278 = vadd.f32 %v268, %v276
  %v279 = vtanh.pop %v278
  %281 = vrot.lane.b32.xlu0 %v279, 64
  %v282 = vpop.permute.xlu0 %281
  %v284 = vmul.f32 %v266, %v282
  %286 = vrot.lane.b32.xlu0 %v284, 32
  %v287 = vpop.permute.xlu0 %286
  %v288 = vsel %vm186, %v287, 0
  %290 = vmatprep.subr.mxu0 0.0
  %291 = vmatpush1.msra.mxu0 0.0
  %292 = vmatprep.subr.mxu0 0.0
  %293 = vmatpush1.msra.mxu0 0.0
  %294 = vmatprep.subr.mxu0 0.0
  %295 = vmatpush1.msra.mxu0 0.0
  %296 = vmatprep.subr.mxu0 0.0
  %297 = vmatpush1.msra.mxu0 0.0
  %298 = vmatprep.subr.mxu0 0.0
  %299 = vmatpush1.msra.mxu0 0.0
  %300 = vmatprep.subr.mxu0 0.0
  %301 = vmatpush1.msra.mxu0 0.0
  %302 = vmatprep.subr.mxu0 0.0
  %303 = vmatpush1.msra.mxu0 0.0
  %304 = vmatprep.subr.mxu0 0.0
  %305 = vmatpush1.msra.mxu0 0.0
  %306 = vmatprep.subr.mxu0 0.0
  %307 = vmatpush1.msra.mxu0 0.0
  %308 = vmatprep.subr.mxu0 0.0
  %309 = vmatpush1.msra.mxu0 0.0
  %310 = vmatprep.subr.mxu0 0.0
  %311 = vmatpush1.msra.mxu0 0.0
  %312 = vmatprep.subr.mxu0 0.0
  %313 = vmatpush1.msra.mxu0 0.0
  %314 = vmatprep.subr.mxu0 0.0
  %315 = vmatpush1.msra.mxu0 %v44
  %316 = vmatprep.subr.mxu0 0.0
  %317 = vmatpush1.msra.mxu0 %v43
  %318 = vmatprep.subr.mxu0 0.0
  %319 = vmatpush1.msra.mxu0 %v42
  %320 = vmatprep.subr.mxu0 0.0
  %321 = vmatpush1.msra.mxu0 %v41
  %322 = vmatprep.subr.mxu0 0.0
  %323 = vmatpush2.msra.mxu0 0.0
  %324 = vmatprep.subr.mxu0 0.0
  %325 = vmatpush2.msra.mxu0 0.0
  %326 = vmatprep.subr.mxu0 0.0
  %327 = vmatpush2.msra.mxu0 0.0
  %328 = vmatprep.subr.mxu0 0.0
  %329 = vmatpush2.msra.mxu0 0.0
  %330 = vmatprep.subr.mxu0 0.0
  %331 = vmatpush2.msra.mxu0 0.0
  %332 = vmatprep.subr.mxu0 0.0
  %333 = vmatpush2.msra.mxu0 0.0
  %334 = vmatprep.subr.mxu0 0.0
  %335 = vmatpush2.msra.mxu0 0.0
  %336 = vmatprep.subr.mxu0 0.0
  %337 = vmatpush2.msra.mxu0 0.0
  %338 = vmatprep.subr.mxu0 0.0
  %339 = vmatpush2.msra.mxu0 0.0
  %340 = vmatprep.subr.mxu0 0.0
  %341 = vmatpush2.msra.mxu0 0.0
  %342 = vmatprep.subr.mxu0 0.0
  %343 = vmatpush2.msra.mxu0 0.0
  %344 = vmatprep.subr.mxu0 0.0
  %345 = vmatpush2.msra.mxu0 0.0
  %346 = vmatprep.subr.mxu0 0.0
  %347 = vmatpush2.msra.mxu0 0.0
  %348 = vmatprep.subr.mxu0 0.0
  %349 = vmatpush2.msra.mxu0 0.0
  %350 = vmatprep.subr.mxu0 0.0
  %351 = vmatpush2.msra.mxu0 0.0
  %352 = vmatprep.subr.mxu0 0.0
  %353 = vmatpush2.msra.mxu0 0.0
  %354 = vmatprep.mubr.f32.mxu0 0.0
  %355 = vmatmul.mubr.f32.gmra.mxu0 %v288
  %v356 = vpop.f32.mrf.mxu0
  %v357 = vadd.f32 0.0, %v356
  %v358 = vpop.f32.mrf.mxu0
  %359 = vdwg.mxu0
  %v360 = vadd.f32 %v153, %v357
  %v361 = vxor.u32 %v360, 2147483648
  %v362 = vmul.f32 %v361, 1.442695
  %v363 = vpow.pop %v362
  %v364 = vadd.f32 %v363, 1.0
  %v365 = vrcp.pop %v364
  %v366 = vmul.f32 1.0, %v365
  %v367 = vtanh.pop %v360
  %v368 = vmul.f32 %v366, %v278
  %370 = vrot.lane.b32.xlu0 %v367, 64
  %v371 = vpop.permute.xlu0 %370
  %v373 = vmul.f32 %v366, %v371
  %375 = vrot.lane.b32.xlu0 %v373, 32
  %v376 = vpop.permute.xlu0 %375
  %v378 = vadd.f32 %v368, %v376
  %v379 = vtanh.pop %v378
  %381 = vrot.lane.b32.xlu0 %v379, 64
  %v382 = vpop.permute.xlu0 %381
  %v384 = vmul.f32 %v366, %v382
  %386 = vrot.lane.b32.xlu0 %v384, 32
  %v387 = vpop.permute.xlu0 %386
  %v388 = vsel %vm186, %v387, 0
  %390 = vmatprep.subr.mxu0 0.0
  %391 = vmatpush1.msra.mxu0 0.0
  %392 = vmatprep.subr.mxu0 0.0
  %393 = vmatpush1.msra.mxu0 0.0
  %394 = vmatprep.subr.mxu0 0.0
  %395 = vmatpush1.msra.mxu0 0.0
  %396 = vmatprep.subr.mxu0 0.0
  %397 = vmatpush1.msra.mxu0 0.0
  %398 = vmatprep.subr.mxu0 0.0
  %399 = vmatpush1.msra.mxu0 0.0
  %400 = vmatprep.subr.mxu0 0.0
  %401 = vmatpush1.msra.mxu0 0.0
  %402 = vmatprep.subr.mxu0 0.0
  %403 = vmatpush1.msra.mxu0 0.0
  %404 = vmatprep.subr.mxu0 0.0
  %405 = vmatpush1.msra.mxu0 0.0
  %406 = vmatprep.subr.mxu0 0.0
  %407 = vmatpush1.msra.mxu0 0.0
  %408 = vmatprep.subr.mxu0 0.0
  %409 = vmatpush1.msra.mxu0 0.0
  %410 = vmatprep.subr.mxu0 0.0
  %411 = vmatpush1.msra.mxu0 0.0
  %412 = vmatprep.subr.mxu0 0.0
  %413 = vmatpush1.msra.mxu0 0.0
  %414 = vmatprep.subr.mxu0 0.0
  %415 = vmatpush1.msra.mxu0 %v44
  %416 = vmatprep.subr.mxu0 0.0
  %417 = vmatpush1.msra.mxu0 %v43
  %418 = vmatprep.subr.mxu0 0.0
  %419 = vmatpush1.msra.mxu0 %v42
  %420 = vmatprep.subr.mxu0 0.0
  %421 = vmatpush1.msra.mxu0 %v41
  %422 = vmatprep.subr.mxu0 0.0
  %423 = vmatpush2.msra.mxu0 0.0
  %424 = vmatprep.subr.mxu0 0.0
  %425 = vmatpush2.msra.mxu0 0.0
  %426 = vmatprep.subr.mxu0 0.0
  %427 = vmatpush2.msra.mxu0 0.0
  %428 = vmatprep.subr.mxu0 0.0
  %429 = vmatpush2.msra.mxu0 0.0
  %430 = vmatprep.subr.mxu0 0.0
  %431 = vmatpush2.msra.mxu0 0.0
  %432 = vmatprep.subr.mxu0 0.0
  %433 = vmatpush2.msra.mxu0 0.0
  %434 = vmatprep.subr.mxu0 0.0
  %435 = vmatpush2.msra.mxu0 0.0
  %436 = vmatprep.subr.mxu0 0.0
  %437 = vmatpush2.msra.mxu0 0.0
  %438 = vmatprep.subr.mxu0 0.0
  %439 = vmatpush2.msra.mxu0 0.0
  %440 = vmatprep.subr.mxu0 0.0
  %441 = vmatpush2.msra.mxu0 0.0
  %442 = vmatprep.subr.mxu0 0.0
  %443 = vmatpush2.msra.mxu0 0.0
  %444 = vmatprep.subr.mxu0 0.0
  %445 = vmatpush2.msra.mxu0 0.0
  %446 = vmatprep.subr.mxu0 0.0
  %447 = vmatpush2.msra.mxu0 0.0
  %448 = vmatprep.subr.mxu0 0.0
  %449 = vmatpush2.msra.mxu0 0.0
  %450 = vmatprep.subr.mxu0 0.0
  %451 = vmatpush2.msra.mxu0 0.0
  %452 = vmatprep.subr.mxu0 0.0
  %453 = vmatpush2.msra.mxu0 0.0
  %454 = vmatprep.mubr.f32.mxu0 0.0
  %455 = vmatmul.mubr.f32.gmra.mxu0 %v388
  %v456 = vpop.f32.mrf.mxu0
  %v457 = vadd.f32 0.0, %v456
  %v458 = vpop.f32.mrf.mxu0
  %459 = vdwg.mxu0
  %v460 = vadd.f32 %v158, %v457
  %v461 = vxor.u32 %v460, 2147483648
  %v462 = vmul.f32 %v461, 1.442695
  %v463 = vpow.pop %v462
  %v464 = vadd.f32 %v463, 1.0
  %v465 = vrcp.pop %v464
  %v466 = vmul.f32 1.0, %v465
  %v467 = vtanh.pop %v460
  %v468 = vmul.f32 %v466, %v378
  %470 = vrot.lane.b32.xlu0 %v467, 64
  %v471 = vpop.permute.xlu0 %470
  %v473 = vmul.f32 %v466, %v471
  %475 = vrot.lane.b32.xlu0 %v473, 32
  %v476 = vpop.permute.xlu0 %475
  %v478 = vadd.f32 %v468, %v476
  %v479 = vtanh.pop %v478
  %481 = vrot.lane.b32.xlu0 %v479, 64
  %v482 = vpop.permute.xlu0 %481
  %v484 = vmul.f32 %v466, %v482
  %486 = vrot.lane.b32.xlu0 %v484, 32
  %v487 = vpop.permute.xlu0 %486
  %v488 = vsel %vm186, %v487, 0
  %490 = vmatprep.subr.mxu0 0.0
  %491 = vmatpush1.msra.mxu0 0.0
  %492 = vmatprep.subr.mxu0 0.0
  %493 = vmatpush1.msra.mxu0 0.0
  %494 = vmatprep.subr.mxu0 0.0
  %495 = vmatpush1.msra.mxu0 0.0
  %496 = vmatprep.subr.mxu0 0.0
  %497 = vmatpush1.msra.mxu0 0.0
  %498 = vmatprep.subr.mxu0 0.0
  %499 = vmatpush1.msra.mxu0 0.0
  %500 = vmatprep.subr.mxu0 0.0
  %501 = vmatpush1.msra.mxu0 0.0
  %502 = vmatprep.subr.mxu0 0.0
  %503 = vmatpush1.msra.mxu0 0.0
  %504 = vmatprep.subr.mxu0 0.0
  %505 = vmatpush1.msra.mxu0 0.0
  %506 = vmatprep.subr.mxu0 0.0
  %507 = vmatpush1.msra.mxu0 0.0
  %508 = vmatprep.subr.mxu0 0.0
  %509 = vmatpush1.msra.mxu0 0.0
  %510 = vmatprep.subr.mxu0 0.0
  %511 = vmatpush1.msra.mxu0 0.0
  %512 = vmatprep.subr.mxu0 0.0
  %513 = vmatpush1.msra.mxu0 0.0
  %514 = vmatprep.subr.mxu0 0.0
  %515 = vmatpush1.msra.mxu0 %v44
  %516 = vmatprep.subr.mxu0 0.0
  %517 = vmatpush1.msra.mxu0 %v43
  %518 = vmatprep.subr.mxu0 0.0
  %519 = vmatpush1.msra.mxu0 %v42
  %520 = vmatprep.subr.mxu0 0.0
  %521 = vmatpush1.msra.mxu0 %v41
  %522 = vmatprep.subr.mxu0 0.0
  %523 = vmatpush2.msra.mxu0 0.0
  %524 = vmatprep.subr.mxu0 0.0
  %525 = vmatpush2.msra.mxu0 0.0
  %526 = vmatprep.subr.mxu0 0.0
  %527 = vmatpush2.msra.mxu0 0.0
  %528 = vmatprep.subr.mxu0 0.0
  %529 = vmatpush2.msra.mxu0 0.0
  %530 = vmatprep.subr.mxu0 0.0
  %531 = vmatpush2.msra.mxu0 0.0
  %532 = vmatprep.subr.mxu0 0.0
  %533 = vmatpush2.msra.mxu0 0.0
  %534 = vmatprep.subr.mxu0 0.0
  %535 = vmatpush2.msra.mxu0 0.0
  %536 = vmatprep.subr.mxu0 0.0
  %537 = vmatpush2.msra.mxu0 0.0
  %538 = vmatprep.subr.mxu0 0.0
  %539 = vmatpush2.msra.mxu0 0.0
  %540 = vmatprep.subr.mxu0 0.0
  %541 = vmatpush2.msra.mxu0 0.0
  %542 = vmatprep.subr.mxu0 0.0
  %543 = vmatpush2.msra.mxu0 0.0
  %544 = vmatprep.subr.mxu0 0.0
  %545 = vmatpush2.msra.mxu0 0.0
  %546 = vmatprep.subr.mxu0 0.0
  %547 = vmatpush2.msra.mxu0 0.0
  %548 = vmatprep.subr.mxu0 0.0
  %549 = vmatpush2.msra.mxu0 0.0
  %550 = vmatprep.subr.mxu0 0.0
  %551 = vmatpush2.msra.mxu0 0.0
  %552 = vmatprep.subr.mxu0 0.0
  %553 = vmatpush2.msra.mxu0 0.0
  %554 = vmatprep.mubr.f32.mxu0 0.0
  %555 = vmatmul.mubr.f32.gmra.mxu0 %v488
  %v556 = vpop.f32.mrf.mxu0
  %v557 = vadd.f32 0.0, %v556
  %v558 = vpop.f32.mrf.mxu0
  %559 = vdwg.mxu0
  %v560 = vadd.f32 %v163, %v557
  %v561 = vxor.u32 %v560, 2147483648
  %v562 = vmul.f32 %v561, 1.442695
  %v563 = vpow.pop %v562
  %v564 = vadd.f32 %v563, 1.0
  %v565 = vrcp.pop %v564
  %v566 = vmul.f32 1.0, %v565
  %v567 = vtanh.pop %v560
  %v568 = vmul.f32 %v566, %v478
  %570 = vrot.lane.b32.xlu0 %v567, 64
  %v571 = vpop.permute.xlu0 %570
  %v573 = vmul.f32 %v566, %v571
  %575 = vrot.lane.b32.xlu0 %v573, 32
  %v576 = vpop.permute.xlu0 %575
  %v578 = vadd.f32 %v568, %v576
  %v579 = vtanh.pop %v578
  %581 = vrot.lane.b32.xlu0 %v579, 64
  %v582 = vpop.permute.xlu0 %581
  %v584 = vmul.f32 %v566, %v582
  %586 = vrot.lane.b32.xlu0 %v584, 32
  %v587 = vpop.permute.xlu0 %586
  %v588 = vsel %vm186, %v587, 0
  %590 = vmatprep.subr.mxu0 0.0
  %591 = vmatpush1.msra.mxu0 0.0
  %592 = vmatprep.subr.mxu0 0.0
  %593 = vmatpush1.msra.mxu0 0.0
  %594 = vmatprep.subr.mxu0 0.0
  %595 = vmatpush1.msra.mxu0 0.0
  %596 = vmatprep.subr.mxu0 0.0
  %597 = vmatpush1.msra.mxu0 0.0
  %598 = vmatprep.subr.mxu0 0.0
  %599 = vmatpush1.msra.mxu0 0.0
  %600 = vmatprep.subr.mxu0 0.0
  %601 = vmatpush1.msra.mxu0 0.0
  %602 = vmatprep.subr.mxu0 0.0
  %603 = vmatpush1.msra.mxu0 0.0
  %604 = vmatprep.subr.mxu0 0.0
  %605 = vmatpush1.msra.mxu0 0.0
  %606 = vmatprep.subr.mxu0 0.0
  %607 = vmatpush1.msra.mxu0 0.0
  %608 = vmatprep.subr.mxu0 0.0
  %609 = vmatpush1.msra.mxu0 0.0
  %610 = vmatprep.subr.mxu0 0.0
  %611 = vmatpush1.msra.mxu0 0.0
  %612 = vmatprep.subr.mxu0 0.0
  %613 = vmatpush1.msra.mxu0 0.0
  %614 = vmatprep.subr.mxu0 0.0
  %615 = vmatpush1.msra.mxu0 %v44
  %616 = vmatprep.subr.mxu0 0.0
  %617 = vmatpush1.msra.mxu0 %v43
  %618 = vmatprep.subr.mxu0 0.0
  %619 = vmatpush1.msra.mxu0 %v42
  %620 = vmatprep.subr.mxu0 0.0
  %621 = vmatpush1.msra.mxu0 %v41
  %622 = vmatprep.subr.mxu0 0.0
  %623 = vmatpush2.msra.mxu0 0.0
  %624 = vmatprep.subr.mxu0 0.0
  %625 = vmatpush2.msra.mxu0 0.0
  %626 = vmatprep.subr.mxu0 0.0
  %627 = vmatpush2.msra.mxu0 0.0
  %628 = vmatprep.subr.mxu0 0.0
  %629 = vmatpush2.msra.mxu0 0.0
  %630 = vmatprep.subr.mxu0 0.0
  %631 = vmatpush2.msra.mxu0 0.0
  %632 = vmatprep.subr.mxu0 0.0
  %633 = vmatpush2.msra.mxu0 0.0
  %634 = vmatprep.subr.mxu0 0.0
  %635 = vmatpush2.msra.mxu0 0.0
  %636 = vmatprep.subr.mxu0 0.0
  %637 = vmatpush2.msra.mxu0 0.0
  %638 = vmatprep.subr.mxu0 0.0
  %639 = vmatpush2.msra.mxu0 0.0
  %640 = vmatprep.subr.mxu0 0.0
  %641 = vmatpush2.msra.mxu0 0.0
  %642 = vmatprep.subr.mxu0 0.0
  %643 = vmatpush2.msra.mxu0 0.0
  %644 = vmatprep.subr.mxu0 0.0
  %645 = vmatpush2.msra.mxu0 0.0
  %646 = vmatprep.subr.mxu0 0.0
  %647 = vmatpush2.msra.mxu0 0.0
  %648 = vmatprep.subr.mxu0 0.0
  %649 = vmatpush2.msra.mxu0 0.0
  %650 = vmatprep.subr.mxu0 0.0
  %651 = vmatpush2.msra.mxu0 0.0
  %652 = vmatprep.subr.mxu0 0.0
  %653 = vmatpush2.msra.mxu0 0.0
  %654 = vmatprep.mubr.f32.mxu0 0.0
  %655 = vmatmul.mubr.f32.gmra.mxu0 %v588
  %v656 = vpop.f32.mrf.mxu0
  %v657 = vadd.f32 0.0, %v656
  %v658 = vpop.f32.mrf.mxu0
  %659 = vdwg.mxu0
  %v660 = vadd.f32 %v168, %v657
  %v661 = vxor.u32 %v660, 2147483648
  %v662 = vmul.f32 %v661, 1.442695
  %v663 = vpow.pop %v662
  %v664 = vadd.f32 %v663, 1.0
  %v665 = vrcp.pop %v664
  %v666 = vmul.f32 1.0, %v665
  %v667 = vtanh.pop %v660
  %v668 = vmul.f32 %v666, %v578
  %670 = vrot.lane.b32.xlu0 %v667, 64
  %v671 = vpop.permute.xlu0 %670
  %v673 = vmul.f32 %v666, %v671
  %675 = vrot.lane.b32.xlu0 %v673, 32
  %v676 = vpop.permute.xlu0 %675
  %v678 = vadd.f32 %v668, %v676
  %v679 = vtanh.pop %v678
  %681 = vrot.lane.b32.xlu0 %v679, 64
  %v682 = vpop.permute.xlu0 %681
  %v684 = vmul.f32 %v666, %v682
  %686 = vrot.lane.b32.xlu0 %v684, 32
  %v687 = vpop.permute.xlu0 %686
  %v688 = vsel %vm186, %v687, 0
  %690 = vmatprep.subr.mxu0 0.0
  %691 = vmatpush1.msra.mxu0 0.0
  %692 = vmatprep.subr.mxu0 0.0
  %693 = vmatpush1.msra.mxu0 0.0
  %694 = vmatprep.subr.mxu0 0.0
  %695 = vmatpush1.msra.mxu0 0.0
  %696 = vmatprep.subr.mxu0 0.0
  %697 = vmatpush1.msra.mxu0 0.0
  %698 = vmatprep.subr.mxu0 0.0
  %699 = vmatpush1.msra.mxu0 0.0
  %700 = vmatprep.subr.mxu0 0.0
  %701 = vmatpush1.msra.mxu0 0.0
  %702 = vmatprep.subr.mxu0 0.0
  %703 = vmatpush1.msra.mxu0 0.0
  %704 = vmatprep.subr.mxu0 0.0
  %705 = vmatpush1.msra.mxu0 0.0
  %706 = vmatprep.subr.mxu0 0.0
  %707 = vmatpush1.msra.mxu0 0.0
  %708 = vmatprep.subr.mxu0 0.0
  %709 = vmatpush1.msra.mxu0 0.0
  %710 = vmatprep.subr.mxu0 0.0
  %711 = vmatpush1.msra.mxu0 0.0
  %712 = vmatprep.subr.mxu0 0.0
  %713 = vmatpush1.msra.mxu0 0.0
  %714 = vmatprep.subr.mxu0 0.0
  %715 = vmatpush1.msra.mxu0 %v44
  %716 = vmatprep.subr.mxu0 0.0
  %717 = vmatpush1.msra.mxu0 %v43
  %718 = vmatprep.subr.mxu0 0.0
  %719 = vmatpush1.msra.mxu0 %v42
  %720 = vmatprep.subr.mxu0 0.0
  %721 = vmatpush1.msra.mxu0 %v41
  %722 = vmatprep.subr.mxu0 0.0
  %723 = vmatpush2.msra.mxu0 0.0
  %724 = vmatprep.subr.mxu0 0.0
  %725 = vmatpush2.msra.mxu0 0.0
  %726 = vmatprep.subr.mxu0 0.0
  %727 = vmatpush2.msra.mxu0 0.0
  %728 = vmatprep.subr.mxu0 0.0
  %729 = vmatpush2.msra.mxu0 0.0
  %730 = vmatprep.subr.mxu0 0.0
  %731 = vmatpush2.msra.mxu0 0.0
  %732 = vmatprep.subr.mxu0 0.0
  %733 = vmatpush2.msra.mxu0 0.0
  %734 = vmatprep.subr.mxu0 0.0
  %735 = vmatpush2.msra.mxu0 0.0
  %736 = vmatprep.subr.mxu0 0.0
  %737 = vmatpush2.msra.mxu0 0.0
  %738 = vmatprep.subr.mxu0 0.0
  %739 = vmatpush2.msra.mxu0 0.0
  %740 = vmatprep.subr.mxu0 0.0
  %741 = vmatpush2.msra.mxu0 0.0
  %742 = vmatprep.subr.mxu0 0.0
  %743 = vmatpush2.msra.mxu0 0.0
  %744 = vmatprep.subr.mxu0 0.0
  %745 = vmatpush2.msra.mxu0 0.0
  %746 = vmatprep.subr.mxu0 0.0
  %747 = vmatpush2.msra.mxu0 0.0
  %748 = vmatprep.subr.mxu0 0.0
  %749 = vmatpush2.msra.mxu0 0.0
  %750 = vmatprep.subr.mxu0 0.0
  %751 = vmatpush2.msra.mxu0 0.0
  %752 = vmatprep.subr.mxu0 0.0
  %753 = vmatpush2.msra.mxu0 0.0
  %754 = vmatprep.mubr.f32.mxu0 0.0
  %755 = vmatmul.mubr.f32.gmra.mxu0 %v688
  %v756 = vpop.f32.mrf.mxu0
  %v757 = vadd.f32 0.0, %v756
  %v758 = vpop.f32.mrf.mxu0
  %759 = vdwg.mxu0
  %v760 = vadd.f32 %v173, %v757
  %v761 = vxor.u32 %v760, 2147483648
  %v762 = vmul.f32 %v761, 1.442695
  %v763 = vpow.pop %v762
  %v764 = vadd.f32 %v763, 1.0
  %v765 = vrcp.pop %v764
  %v766 = vmul.f32 1.0, %v765
  %v767 = vtanh.pop %v760
  %v768 = vmul.f32 %v766, %v678
  %770 = vrot.lane.b32.xlu0 %v767, 64
  %v771 = vpop.permute.xlu0 %770
  %v773 = vmul.f32 %v766, %v771
  %775 = vrot.lane.b32.xlu0 %v773, 32
  %v776 = vpop.permute.xlu0 %775
  %v778 = vadd.f32 %v768, %v776
  %v779 = vtanh.pop %v778
  %781 = vrot.lane.b32.xlu0 %v779, 64
  %v782 = vpop.permute.xlu0 %781
  %v784 = vmul.f32 %v766, %v782
  %786 = vrot.lane.b32.xlu0 %v784, 32
  %v787 = vpop.permute.xlu0 %786
  %v788 = vsel %vm186, %v787, 0
  %790 = vmatprep.subr.mxu0 0.0
  %791 = vmatpush1.msra.mxu0 0.0
  %792 = vmatprep.subr.mxu0 0.0
  %793 = vmatpush1.msra.mxu0 0.0
  %794 = vmatprep.subr.mxu0 0.0
  %795 = vmatpush1.msra.mxu0 0.0
  %796 = vmatprep.subr.mxu0 0.0
  %797 = vmatpush1.msra.mxu0 0.0
  %798 = vmatprep.subr.mxu0 0.0
  %799 = vmatpush1.msra.mxu0 0.0
  %800 = vmatprep.subr.mxu0 0.0
  %801 = vmatpush1.msra.mxu0 0.0
  %802 = vmatprep.subr.mxu0 0.0
  %803 = vmatpush1.msra.mxu0 0.0
  %804 = vmatprep.subr.mxu0 0.0
  %805 = vmatpush1.msra.mxu0 0.0
  %806 = vmatprep.subr.mxu0 0.0
  %807 = vmatpush1.msra.mxu0 0.0
  %808 = vmatprep.subr.mxu0 0.0
  %809 = vmatpush1.msra.mxu0 0.0
  %810 = vmatprep.subr.mxu0 0.0
  %811 = vmatpush1.msra.mxu0 0.0
  %812 = vmatprep.subr.mxu0 0.0
  %813 = vmatpush1.msra.mxu0 0.0
  %814 = vmatprep.subr.mxu0 0.0
  %815 = vmatpush1.msra.mxu0 %v44
  %816 = vmatprep.subr.mxu0 0.0
  %817 = vmatpush1.msra.mxu0 %v43
  %818 = vmatprep.subr.mxu0 0.0
  %819 = vmatpush1.msra.mxu0 %v42
  %820 = vmatprep.subr.mxu0 0.0
  %821 = vmatpush1.msra.mxu0 %v41
  %822 = vmatprep.subr.mxu0 0.0
  %823 = vmatpush2.msra.mxu0 0.0
  %824 = vmatprep.subr.mxu0 0.0
  %825 = vmatpush2.msra.mxu0 0.0
  %826 = vmatprep.subr.mxu0 0.0
  %827 = vmatpush2.msra.mxu0 0.0
  %828 = vmatprep.subr.mxu0 0.0
  %829 = vmatpush2.msra.mxu0 0.0
  %830 = vmatprep.subr.mxu0 0.0
  %831 = vmatpush2.msra.mxu0 0.0
  %832 = vmatprep.subr.mxu0 0.0
  %833 = vmatpush2.msra.mxu0 0.0
  %834 = vmatprep.subr.mxu0 0.0
  %835 = vmatpush2.msra.mxu0 0.0
  %836 = vmatprep.subr.mxu0 0.0
  %837 = vmatpush2.msra.mxu0 0.0
  %838 = vmatprep.subr.mxu0 0.0
  %839 = vmatpush2.msra.mxu0 0.0
  %840 = vmatprep.subr.mxu0 0.0
  %841 = vmatpush2.msra.mxu0 0.0
  %842 = vmatprep.subr.mxu0 0.0
  %843 = vmatpush2.msra.mxu0 0.0
  %844 = vmatprep.subr.mxu0 0.0
  %845 = vmatpush2.msra.mxu0 0.0
  %846 = vmatprep.subr.mxu0 0.0
  %847 = vmatpush2.msra.mxu0 0.0
  %848 = vmatprep.subr.mxu0 0.0
  %849 = vmatpush2.msra.mxu0 0.0
  %850 = vmatprep.subr.mxu0 0.0
  %851 = vmatpush2.msra.mxu0 0.0
  %852 = vmatprep.subr.mxu0 0.0
  %853 = vmatpush2.msra.mxu0 0.0
  %854 = vmatprep.mubr.f32.mxu0 0.0
  %855 = vmatmul.mubr.f32.gmra.mxu0 %v788
  %v856 = vpop.f32.mrf.mxu0
  %v857 = vadd.f32 0.0, %v856
  %v858 = vpop.f32.mrf.mxu0
  %859 = vdwg.mxu0
  %v860 = vadd.f32 %v178, %v857
  %v861 = vxor.u32 %v860, 2147483648
  %v862 = vmul.f32 %v861, 1.442695
  %v863 = vpow.pop %v862
  %v864 = vadd.f32 %v863, 1.0
  %v865 = vrcp.pop %v864
  %v866 = vmul.f32 1.0, %v865
  %v867 = vtanh.pop %v860
  %v868 = vmul.f32 %v866, %v778
  %870 = vrot.lane.b32.xlu0 %v867, 64
  %v871 = vpop.permute.xlu0 %870
  %v873 = vmul.f32 %v866, %v871
  %875 = vrot.lane.b32.xlu0 %v873, 32
  %v876 = vpop.permute.xlu0 %875
  %v878 = vadd.f32 %v868, %v876
  %v879 = vtanh.pop %v878
  %881 = vrot.lane.b32.xlu0 %v879, 64
  %v882 = vpop.permute.xlu0 %881
  %v884 = vmul.f32 %v866, %v882
  %886 = vrot.lane.b32.xlu0 %v884, 32
  %v887 = vpop.permute.xlu0 %886
  %v888 = vsel %vm186, %v887, 0
  %890 = vmatprep.subr.mxu0 0.0
  %891 = vmatpush1.msra.mxu0 0.0
  %892 = vmatprep.subr.mxu0 0.0
  %893 = vmatpush1.msra.mxu0 0.0
  %894 = vmatprep.subr.mxu0 0.0
  %895 = vmatpush1.msra.mxu0 0.0
  %896 = vmatprep.subr.mxu0 0.0
  %897 = vmatpush1.msra.mxu0 0.0
  %898 = vmatprep.subr.mxu0 0.0
  %899 = vmatpush1.msra.mxu0 0.0
  %900 = vmatprep.subr.mxu0 0.0
  %901 = vmatpush1.msra.mxu0 0.0
  %902 = vmatprep.subr.mxu0 0.0
  %903 = vmatpush1.msra.mxu0 0.0
  %904 = vmatprep.subr.mxu0 0.0
  %905 = vmatpush1.msra.mxu0 0.0
  %906 = vmatprep.subr.mxu0 0.0
  %907 = vmatpush1.msra.mxu0 0.0
  %908 = vmatprep.subr.mxu0 0.0
  %909 = vmatpush1.msra.mxu0 0.0
  %910 = vmatprep.subr.mxu0 0.0
  %911 = vmatpush1.msra.mxu0 0.0
  %912 = vmatprep.subr.mxu0 0.0
  %913 = vmatpush1.msra.mxu0 0.0
  %914 = vmatprep.subr.mxu0 0.0
  %915 = vmatpush1.msra.mxu0 %v44
  %916 = vmatprep.subr.mxu0 0.0
  %917 = vmatpush1.msra.mxu0 %v43
  %918 = vmatprep.subr.mxu0 0.0
  %919 = vmatpush1.msra.mxu0 %v42
  %920 = vmatprep.subr.mxu0 0.0
  %921 = vmatpush1.msra.mxu0 %v41
  %922 = vmatprep.subr.mxu0 0.0
  %923 = vmatpush2.msra.mxu0 0.0
  %924 = vmatprep.subr.mxu0 0.0
  %925 = vmatpush2.msra.mxu0 0.0
  %926 = vmatprep.subr.mxu0 0.0
  %927 = vmatpush2.msra.mxu0 0.0
  %928 = vmatprep.subr.mxu0 0.0
  %929 = vmatpush2.msra.mxu0 0.0
  %930 = vmatprep.subr.mxu0 0.0
  %931 = vmatpush2.msra.mxu0 0.0
  %932 = vmatprep.subr.mxu0 0.0
  %933 = vmatpush2.msra.mxu0 0.0
  %934 = vmatprep.subr.mxu0 0.0
  %935 = vmatpush2.msra.mxu0 0.0
  %936 = vmatprep.subr.mxu0 0.0
  %937 = vmatpush2.msra.mxu0 0.0
  %938 = vmatprep.subr.mxu0 0.0
  %939 = vmatpush2.msra.mxu0 0.0
  %940 = vmatprep.subr.mxu0 0.0
  %941 = vmatpush2.msra.mxu0 0.0
  %942 = vmatprep.subr.mxu0 0.0
  %943 = vmatpush2.msra.mxu0 0.0
  %944 = vmatprep.subr.mxu0 0.0
  %945 = vmatpush2.msra.mxu0 0.0
  %946 = vmatprep.subr.mxu0 0.0
  %947 = vmatpush2.msra.mxu0 0.0
  %948 = vmatprep.subr.mxu0 0.0
  %949 = vmatpush2.msra.mxu0 0.0
  %950 = vmatprep.subr.mxu0 0.0
  %951 = vmatpush2.msra.mxu0 0.0
  %952 = vmatprep.subr.mxu0 0.0
  %953 = vmatpush2.msra.mxu0 0.0
  %954 = vmatprep.mubr.f32.mxu0 0.0
  %955 = vmatmul.mubr.f32.gmra.mxu0 %v888
  %v956 = vpop.f32.mrf.mxu0
  %v957 = vadd.f32 0.0, %v956
  %v958 = vpop.f32.mrf.mxu0
  %959 = vdwg.mxu0
  %v960 = vadd.f32 %v183, %v957
  %v961 = vxor.u32 %v960, 2147483648
  %v962 = vmul.f32 %v961, 1.442695
  %v963 = vpow.pop %v962
  %v964 = vadd.f32 %v963, 1.0
  %v965 = vrcp.pop %v964
  %v966 = vmul.f32 1.0, %v965
  %v967 = vtanh.pop %v960
  %v968 = vmul.f32 %v966, %v878
  %970 = vrot.lane.b32.xlu0 %v967, 64
  %v971 = vpop.permute.xlu0 %970
  %v973 = vmul.f32 %v966, %v971
  %975 = vrot.lane.b32.xlu0 %v973, 32
  %v976 = vpop.permute.xlu0 %975
  %v978 = vadd.f32 %v968, %v976
  %v979 = vtanh.pop %v978
  %981 = vrot.lane.b32.xlu0 %v979, 64
  %v982 = vpop.permute.xlu0 %981
  %v984 = vmul.f32 %v966, %v982
  %v985 = vld [vmem:[%s4] sm:$0xff]
  %v986 = vld [vmem:[%s4 + $0x8] sm:$0xff]
  %v987 = vld [vmem:[%s4 + $0x10] sm:$0xff]
  %v988 = vld [vmem:[%s4 + $0x18] sm:$0xff]
  %v989 = vld [vmem:[%s5] sm:$0xff]
  %v990 = vld [vmem:[%s5 + $0x8] sm:$0xff]
  %v991 = vld [vmem:[%s5 + $0x10] sm:$0xff]
  %v992 = vld [vmem:[%s5 + $0x18] sm:$0xff]
  %v993 = vld [vmem:[%s6] sm:$0x1]
  %v995 = vlaneseq
  %v996 = vshrl.u32 %v995, 7
  %v997 = vsub.s32 0, %v996
  %v998 = vrot.slane %v993, %v997
  %1001 = vrot.lane.b32.xlu0 %v984, 32
  %v1002 = vpop.permute.xlu0 %1001
  %v1003 = vsel %vm186, %v1002, 0
  %1005 = vmatprep.subr.mxu0 0.0
  %1006 = vmatpush1.msra.mxu0 0.0
  %1007 = vmatprep.subr.mxu0 0.0
  %1008 = vmatpush1.msra.mxu0 0.0
  %1009 = vmatprep.subr.mxu0 0.0
  %1010 = vmatpush1.msra.mxu0 0.0
  %1011 = vmatprep.subr.mxu0 0.0
  %1012 = vmatpush1.msra.mxu0 0.0
  %1013 = vmatprep.subr.mxu0 0.0
  %1014 = vmatpush1.msra.mxu0 0.0
  %1015 = vmatprep.subr.mxu0 0.0
  %1016 = vmatpush1.msra.mxu0 0.0
  %1017 = vmatprep.subr.mxu0 0.0
  %1018 = vmatpush1.msra.mxu0 0.0
  %1019 = vmatprep.subr.mxu0 0.0
  %1020 = vmatpush1.msra.mxu0 0.0
  %1021 = vmatprep.subr.mxu0 0.0
  %1022 = vmatpush1.msra.mxu0 0.0
  %1023 = vmatprep.subr.mxu0 0.0
  %1024 = vmatpush1.msra.mxu0 0.0
  %1025 = vmatprep.subr.mxu0 0.0
  %1026 = vmatpush1.msra.mxu0 0.0
  %1027 = vmatprep.subr.mxu0 0.0
  %1028 = vmatpush1.msra.mxu0 0.0
  %1029 = vmatprep.subr.mxu0 0.0
  %1030 = vmatpush1.msra.mxu0 %v988
  %1031 = vmatprep.subr.mxu0 0.0
  %1032 = vmatpush1.msra.mxu0 %v987
  %1033 = vmatprep.subr.mxu0 0.0
  %1034 = vmatpush1.msra.mxu0 %v986
  %1035 = vmatprep.subr.mxu0 0.0
  %1036 = vmatpush1.msra.mxu0 %v985
  %1037 = vmatprep.subr.mxu0 0.0
  %1038 = vmatpush2.msra.mxu0 0.0
  %1039 = vmatprep.subr.mxu0 0.0
  %1040 = vmatpush2.msra.mxu0 0.0
  %1041 = vmatprep.subr.mxu0 0.0
  %1042 = vmatpush2.msra.mxu0 0.0
  %1043 = vmatprep.subr.mxu0 0.0
  %1044 = vmatpush2.msra.mxu0 0.0
  %1045 = vmatprep.subr.mxu0 0.0
  %1046 = vmatpush2.msra.mxu0 0.0
  %1047 = vmatprep.subr.mxu0 0.0
  %1048 = vmatpush2.msra.mxu0 0.0
  %1049 = vmatprep.subr.mxu0 0.0
  %1050 = vmatpush2.msra.mxu0 0.0
  %1051 = vmatprep.subr.mxu0 0.0
  %1052 = vmatpush2.msra.mxu0 0.0
  %1053 = vmatprep.subr.mxu0 0.0
  %1054 = vmatpush2.msra.mxu0 0.0
  %1055 = vmatprep.subr.mxu0 0.0
  %1056 = vmatpush2.msra.mxu0 0.0
  %1057 = vmatprep.subr.mxu0 0.0
  %1058 = vmatpush2.msra.mxu0 0.0
  %1059 = vmatprep.subr.mxu0 0.0
  %1060 = vmatpush2.msra.mxu0 0.0
  %1061 = vmatprep.subr.mxu0 0.0
  %1062 = vmatpush2.msra.mxu0 0.0
  %1063 = vmatprep.subr.mxu0 0.0
  %1064 = vmatpush2.msra.mxu0 0.0
  %1065 = vmatprep.subr.mxu0 0.0
  %1066 = vmatpush2.msra.mxu0 0.0
  %1067 = vmatprep.subr.mxu0 0.0
  %1068 = vmatpush2.msra.mxu0 0.0
  %1069 = vmatprep.mubr.f32.mxu0 0.0
  %1070 = vmatmul.mubr.f32.gmra.mxu0 %v288
  %v1071 = vpop.f32.mrf.mxu0
  %v1072 = vadd.f32 %v998, %v1071
  %v1073 = vpop.f32.mrf.mxu0
  %1074 = vmatprep.mubr.f32.mxu0 0.0
  %1075 = vmatmul.mubr.f32.gmra.mxu0 %v388
  %v1076 = vpop.f32.mrf.mxu0
  %v1077 = vadd.f32 %v998, %v1076
  %v1078 = vpop.f32.mrf.mxu0
  %1079 = vmatprep.mubr.f32.mxu0 0.0
  %1080 = vmatmul.mubr.f32.gmra.mxu0 %v488
  %v1081 = vpop.f32.mrf.mxu0
  %v1082 = vadd.f32 %v998, %v1081
  %v1083 = vpop.f32.mrf.mxu0
  %1084 = vmatprep.mubr.f32.mxu0 0.0
  %1085 = vmatmul.mubr.f32.gmra.mxu0 %v588
  %v1086 = vpop.f32.mrf.mxu0
  %v1087 = vadd.f32 %v998, %v1086
  %v1088 = vpop.f32.mrf.mxu0
  %1089 = vmatprep.mubr.f32.mxu0 0.0
  %1090 = vmatmul.mubr.f32.gmra.mxu0 %v688
  %v1091 = vpop.f32.mrf.mxu0
  %v1092 = vadd.f32 %v998, %v1091
  %v1093 = vpop.f32.mrf.mxu0
  %1094 = vmatprep.mubr.f32.mxu0 0.0
  %1095 = vmatmul.mubr.f32.gmra.mxu0 %v788
  %v1096 = vpop.f32.mrf.mxu0
  %v1097 = vadd.f32 %v998, %v1096
  %v1098 = vpop.f32.mrf.mxu0
  %1099 = vmatprep.mubr.f32.mxu0 0.0
  %1100 = vmatmul.mubr.f32.gmra.mxu0 %v888
  %v1101 = vpop.f32.mrf.mxu0
  %v1102 = vadd.f32 %v998, %v1101
  %v1103 = vpop.f32.mrf.mxu0
  %1104 = vmatprep.mubr.f32.mxu0 0.0
  %1105 = vmatmul.mubr.f32.gmra.mxu0 %v1003
  %v1106 = vpop.f32.mrf.mxu0
  %v1107 = vadd.f32 %v998, %v1106
  %v1108 = vpop.f32.mrf.mxu0
  %1109 = vdwg.mxu0
  %1110 = vmatprep.subr.mxu0 0.0
  %1111 = vmatpush1.msra.mxu0 0.0
  %1112 = vmatprep.subr.mxu0 0.0
  %1113 = vmatpush1.msra.mxu0 0.0
  %1114 = vmatprep.subr.mxu0 0.0
  %1115 = vmatpush1.msra.mxu0 0.0
  %1116 = vmatprep.subr.mxu0 0.0
  %1117 = vmatpush1.msra.mxu0 0.0
  %1118 = vmatprep.subr.mxu0 0.0
  %1119 = vmatpush1.msra.mxu0 0.0
  %1120 = vmatprep.subr.mxu0 0.0
  %1121 = vmatpush1.msra.mxu0 0.0
  %1122 = vmatprep.subr.mxu0 0.0
  %1123 = vmatpush1.msra.mxu0 0.0
  %1124 = vmatprep.subr.mxu0 0.0
  %1125 = vmatpush1.msra.mxu0 0.0
  %1126 = vmatprep.subr.mxu0 0.0
  %1127 = vmatpush1.msra.mxu0 0.0
  %1128 = vmatprep.subr.mxu0 0.0
  %1129 = vmatpush1.msra.mxu0 0.0
  %1130 = vmatprep.subr.mxu0 0.0
  %1131 = vmatpush1.msra.mxu0 0.0
  %1132 = vmatprep.subr.mxu0 0.0
  %1133 = vmatpush1.msra.mxu0 0.0
  %1134 = vmatprep.subr.mxu0 0.0
  %1135 = vmatpush1.msra.mxu0 %v992
  %1136 = vmatprep.subr.mxu0 0.0
  %1137 = vmatpush1.msra.mxu0 %v991
  %1138 = vmatprep.subr.mxu0 0.0
  %1139 = vmatpush1.msra.mxu0 %v990
  %1140 = vmatprep.subr.mxu0 0.0
  %1141 = vmatpush1.msra.mxu0 %v989
  %1142 = vmatprep.subr.mxu0 0.0
  %1143 = vmatpush2.msra.mxu0 0.0
  %1144 = vmatprep.subr.mxu0 0.0
  %1145 = vmatpush2.msra.mxu0 0.0
  %1146 = vmatprep.subr.mxu0 0.0
  %1147 = vmatpush2.msra.mxu0 0.0
  %1148 = vmatprep.subr.mxu0 0.0
  %1149 = vmatpush2.msra.mxu0 0.0
  %1150 = vmatprep.subr.mxu0 0.0
  %1151 = vmatpush2.msra.mxu0 0.0
  %1152 = vmatprep.subr.mxu0 0.0
  %1153 = vmatpush2.msra.mxu0 0.0
  %1154 = vmatprep.subr.mxu0 0.0
  %1155 = vmatpush2.msra.mxu0 0.0
  %1156 = vmatprep.subr.mxu0 0.0
  %1157 = vmatpush2.msra.mxu0 0.0
  %1158 = vmatprep.subr.mxu0 0.0
  %1159 = vmatpush2.msra.mxu0 0.0
  %1160 = vmatprep.subr.mxu0 0.0
  %1161 = vmatpush2.msra.mxu0 0.0
  %1162 = vmatprep.subr.mxu0 0.0
  %1163 = vmatpush2.msra.mxu0 0.0
  %1164 = vmatprep.subr.mxu0 0.0
  %1165 = vmatpush2.msra.mxu0 0.0
  %1166 = vmatprep.subr.mxu0 0.0
  %1167 = vmatpush2.msra.mxu0 0.0
  %1168 = vmatprep.subr.mxu0 0.0
  %1169 = vmatpush2.msra.mxu0 0.0
  %1170 = vmatprep.subr.mxu0 0.0
  %1171 = vmatpush2.msra.mxu0 0.0
  %1172 = vmatprep.subr.mxu0 0.0
  %1173 = vmatpush2.msra.mxu0 0.0
  %1174 = vmatprep.mubr.f32.mxu0 0.0
  %1175 = vmatmul.mubr.f32.gmra.mxu0 %v188
  %v1176 = vpop.f32.mrf.mxu0
  %v1177 = vadd.f32 0.0, %v1176
  %v1178 = vpop.f32.mrf.mxu0
  %1179 = vdwg.mxu0
  %v1180 = vadd.f32 %v1072, %v1177
  %v1181 = vxor.u32 %v1180, 2147483648
  %v1182 = vmul.f32 %v1181, 1.442695
  %v1183 = vpow.pop %v1182
  %v1184 = vadd.f32 %v1183, 1.0
  %v1185 = vrcp.pop %v1184
  %v1186 = vmul.f32 1.0, %v1185
  %v1187 = vtanh.pop %v1180
  %v1188 = vmul.f32 %v1186, 0.0
  %1190 = vrot.lane.b32.xlu0 %v1187, 64
  %v1191 = vpop.permute.xlu0 %1190
  %v1193 = vmul.f32 %v1186, %v1191
  %1195 = vrot.lane.b32.xlu0 %v1193, 32
  %v1196 = vpop.permute.xlu0 %1195
  %v1198 = vadd.f32 %v1188, %v1196
  %v1199 = vtanh.pop %v1198
  %1201 = vrot.lane.b32.xlu0 %v1199, 64
  %v1202 = vpop.permute.xlu0 %1201
  %v1204 = vmul.f32 %v1186, %v1202
  %1206 = vrot.lane.b32.xlu0 %v1204, 32
  %v1207 = vpop.permute.xlu0 %1206
  %v1208 = vsel %vm186, %v1207, 0
  %1210 = vmatprep.subr.mxu0 0.0
  %1211 = vmatpush1.msra.mxu0 0.0
  %1212 = vmatprep.subr.mxu0 0.0
  %1213 = vmatpush1.msra.mxu0 0.0
  %1214 = vmatprep.subr.mxu0 0.0
  %1215 = vmatpush1.msra.mxu0 0.0
  %1216 = vmatprep.subr.mxu0 0.0
  %1217 = vmatpush1.msra.mxu0 0.0
  %1218 = vmatprep.subr.mxu0 0.0
  %1219 = vmatpush1.msra.mxu0 0.0
  %1220 = vmatprep.subr.mxu0 0.0
  %1221 = vmatpush1.msra.mxu0 0.0
  %1222 = vmatprep.subr.mxu0 0.0
  %1223 = vmatpush1.msra.mxu0 0.0
  %1224 = vmatprep.subr.mxu0 0.0
  %1225 = vmatpush1.msra.mxu0 0.0
  %1226 = vmatprep.subr.mxu0 0.0
  %1227 = vmatpush1.msra.mxu0 0.0
  %1228 = vmatprep.subr.mxu0 0.0
  %1229 = vmatpush1.msra.mxu0 0.0
  %1230 = vmatprep.subr.mxu0 0.0
  %1231 = vmatpush1.msra.mxu0 0.0
  %1232 = vmatprep.subr.mxu0 0.0
  %1233 = vmatpush1.msra.mxu0 0.0
  %1234 = vmatprep.subr.mxu0 0.0
  %1235 = vmatpush1.msra.mxu0 %v992
  %1236 = vmatprep.subr.mxu0 0.0
  %1237 = vmatpush1.msra.mxu0 %v991
  %1238 = vmatprep.subr.mxu0 0.0
  %1239 = vmatpush1.msra.mxu0 %v990
  %1240 = vmatprep.subr.mxu0 0.0
  %1241 = vmatpush1.msra.mxu0 %v989
  %1242 = vmatprep.subr.mxu0 0.0
  %1243 = vmatpush2.msra.mxu0 0.0
  %1244 = vmatprep.subr.mxu0 0.0
  %1245 = vmatpush2.msra.mxu0 0.0
  %1246 = vmatprep.subr.mxu0 0.0
  %1247 = vmatpush2.msra.mxu0 0.0
  %1248 = vmatprep.subr.mxu0 0.0
  %1249 = vmatpush2.msra.mxu0 0.0
  %1250 = vmatprep.subr.mxu0 0.0
  %1251 = vmatpush2.msra.mxu0 0.0
  %1252 = vmatprep.subr.mxu0 0.0
  %1253 = vmatpush2.msra.mxu0 0.0
  %1254 = vmatprep.subr.mxu0 0.0
  %1255 = vmatpush2.msra.mxu0 0.0
  %1256 = vmatprep.subr.mxu0 0.0
  %1257 = vmatpush2.msra.mxu0 0.0
  %1258 = vmatprep.subr.mxu0 0.0
  %1259 = vmatpush2.msra.mxu0 0.0
  %1260 = vmatprep.subr.mxu0 0.0
  %1261 = vmatpush2.msra.mxu0 0.0
  %1262 = vmatprep.subr.mxu0 0.0
  %1263 = vmatpush2.msra.mxu0 0.0
  %1264 = vmatprep.subr.mxu0 0.0
  %1265 = vmatpush2.msra.mxu0 0.0
  %1266 = vmatprep.subr.mxu0 0.0
  %1267 = vmatpush2.msra.mxu0 0.0
  %1268 = vmatprep.subr.mxu0 0.0
  %1269 = vmatpush2.msra.mxu0 0.0
  %1270 = vmatprep.subr.mxu0 0.0
  %1271 = vmatpush2.msra.mxu0 0.0
  %1272 = vmatprep.subr.mxu0 0.0
  %1273 = vmatpush2.msra.mxu0 0.0
  %1274 = vmatprep.mubr.f32.mxu0 0.0
  %1275 = vmatmul.mubr.f32.gmra.mxu0 %v1208
  %v1276 = vpop.f32.mrf.mxu0
  %v1277 = vadd.f32 0.0, %v1276
  %v1278 = vpop.f32.mrf.mxu0
  %1279 = vdwg.mxu0
  %v1280 = vadd.f32 %v1077, %v1277
  %v1281 = vxor.u32 %v1280, 2147483648
  %v1282 = vmul.f32 %v1281, 1.442695
  %v1283 = vpow.pop %v1282
  %v1284 = vadd.f32 %v1283, 1.0
  %v1285 = vrcp.pop %v1284
  %v1286 = vmul.f32 1.0, %v1285
  %v1287 = vtanh.pop %v1280
  %v1288 = vmul.f32 %v1286, %v1198
  %1290 = vrot.lane.b32.xlu0 %v1287, 64
  %v1291 = vpop.permute.xlu0 %1290
  %v1293 = vmul.f32 %v1286, %v1291
  %1295 = vrot.lane.b32.xlu0 %v1293, 32
  %v1296 = vpop.permute.xlu0 %1295
  %v1298 = vadd.f32 %v1288, %v1296
  %v1299 = vtanh.pop %v1298
  %1301 = vrot.lane.b32.xlu0 %v1299, 64
  %v1302 = vpop.permute.xlu0 %1301
  %v1304 = vmul.f32 %v1286, %v1302
  %1306 = vrot.lane.b32.xlu0 %v1304, 32
  %v1307 = vpop.permute.xlu0 %1306
  %v1308 = vsel %vm186, %v1307, 0
  %1310 = vmatprep.subr.mxu0 0.0
  %1311 = vmatpush1.msra.mxu0 0.0
  %1312 = vmatprep.subr.mxu0 0.0
  %1313 = vmatpush1.msra.mxu0 0.0
  %1314 = vmatprep.subr.mxu0 0.0
  %1315 = vmatpush1.msra.mxu0 0.0
  %1316 = vmatprep.subr.mxu0 0.0
  %1317 = vmatpush1.msra.mxu0 0.0
  %1318 = vmatprep.subr.mxu0 0.0
  %1319 = vmatpush1.msra.mxu0 0.0
  %1320 = vmatprep.subr.mxu0 0.0
  %1321 = vmatpush1.msra.mxu0 0.0
  %1322 = vmatprep.subr.mxu0 0.0
  %1323 = vmatpush1.msra.mxu0 0.0
  %1324 = vmatprep.subr.mxu0 0.0
  %1325 = vmatpush1.msra.mxu0 0.0
  %1326 = vmatprep.subr.mxu0 0.0
  %1327 = vmatpush1.msra.mxu0 0.0
  %1328 = vmatprep.subr.mxu0 0.0
  %1329 = vmatpush1.msra.mxu0 0.0
  %1330 = vmatprep.subr.mxu0 0.0
  %1331 = vmatpush1.msra.mxu0 0.0
  %1332 = vmatprep.subr.mxu0 0.0
  %1333 = vmatpush1.msra.mxu0 0.0
  %1334 = vmatprep.subr.mxu0 0.0
  %1335 = vmatpush1.msra.mxu0 %v992
  %1336 = vmatprep.subr.mxu0 0.0
  %1337 = vmatpush1.msra.mxu0 %v991
  %1338 = vmatprep.subr.mxu0 0.0
  %1339 = vmatpush1.msra.mxu0 %v990
  %1340 = vmatprep.subr.mxu0 0.0
  %1341 = vmatpush1.msra.mxu0 %v989
  %1342 = vmatprep.subr.mxu0 0.0
  %1343 = vmatpush2.msra.mxu0 0.0
  %1344 = vmatprep.subr.mxu0 0.0
  %1345 = vmatpush2.msra.mxu0 0.0
  %1346 = vmatprep.subr.mxu0 0.0
  %1347 = vmatpush2.msra.mxu0 0.0
  %1348 = vmatprep.subr.mxu0 0.0
  %1349 = vmatpush2.msra.mxu0 0.0
  %1350 = vmatprep.subr.mxu0 0.0
  %1351 = vmatpush2.msra.mxu0 0.0
  %1352 = vmatprep.subr.mxu0 0.0
  %1353 = vmatpush2.msra.mxu0 0.0
  %1354 = vmatprep.subr.mxu0 0.0
  %1355 = vmatpush2.msra.mxu0 0.0
  %1356 = vmatprep.subr.mxu0 0.0
  %1357 = vmatpush2.msra.mxu0 0.0
  %1358 = vmatprep.subr.mxu0 0.0
  %1359 = vmatpush2.msra.mxu0 0.0
  %1360 = vmatprep.subr.mxu0 0.0
  %1361 = vmatpush2.msra.mxu0 0.0
  %1362 = vmatprep.subr.mxu0 0.0
  %1363 = vmatpush2.msra.mxu0 0.0
  %1364 = vmatprep.subr.mxu0 0.0
  %1365 = vmatpush2.msra.mxu0 0.0
  %1366 = vmatprep.subr.mxu0 0.0
  %1367 = vmatpush2.msra.mxu0 0.0
  %1368 = vmatprep.subr.mxu0 0.0
  %1369 = vmatpush2.msra.mxu0 0.0
  %1370 = vmatprep.subr.mxu0 0.0
  %1371 = vmatpush2.msra.mxu0 0.0
  %1372 = vmatprep.subr.mxu0 0.0
  %1373 = vmatpush2.msra.mxu0 0.0
  %1374 = vmatprep.mubr.f32.mxu0 0.0
  %1375 = vmatmul.mubr.f32.gmra.mxu0 %v1308
  %v1376 = vpop.f32.mrf.mxu0
  %v1377 = vadd.f32 0.0, %v1376
  %v1378 = vpop.f32.mrf.mxu0
  %1379 = vdwg.mxu0
  %v1380 = vadd.f32 %v1082, %v1377
  %v1381 = vxor.u32 %v1380, 2147483648
  %v1382 = vmul.f32 %v1381, 1.442695
  %v1383 = vpow.pop %v1382
  %v1384 = vadd.f32 %v1383, 1.0
  %v1385 = vrcp.pop %v1384
  %v1386 = vmul.f32 1.0, %v1385
  %v1387 = vtanh.pop %v1380
  %v1388 = vmul.f32 %v1386, %v1298
  %1390 = vrot.lane.b32.xlu0 %v1387, 64
  %v1391 = vpop.permute.xlu0 %1390
  %v1393 = vmul.f32 %v1386, %v1391
  %1395 = vrot.lane.b32.xlu0 %v1393, 32
  %v1396 = vpop.permute.xlu0 %1395
  %v1398 = vadd.f32 %v1388, %v1396
  %v1399 = vtanh.pop %v1398
  %1401 = vrot.lane.b32.xlu0 %v1399, 64
  %v1402 = vpop.permute.xlu0 %1401
  %v1404 = vmul.f32 %v1386, %v1402
  %1406 = vrot.lane.b32.xlu0 %v1404, 32
  %v1407 = vpop.permute.xlu0 %1406
  %v1408 = vsel %vm186, %v1407, 0
  %1410 = vmatprep.subr.mxu0 0.0
  %1411 = vmatpush1.msra.mxu0 0.0
  %1412 = vmatprep.subr.mxu0 0.0
  %1413 = vmatpush1.msra.mxu0 0.0
  %1414 = vmatprep.subr.mxu0 0.0
  %1415 = vmatpush1.msra.mxu0 0.0
  %1416 = vmatprep.subr.mxu0 0.0
  %1417 = vmatpush1.msra.mxu0 0.0
  %1418 = vmatprep.subr.mxu0 0.0
  %1419 = vmatpush1.msra.mxu0 0.0
  %1420 = vmatprep.subr.mxu0 0.0
  %1421 = vmatpush1.msra.mxu0 0.0
  %1422 = vmatprep.subr.mxu0 0.0
  %1423 = vmatpush1.msra.mxu0 0.0
  %1424 = vmatprep.subr.mxu0 0.0
  %1425 = vmatpush1.msra.mxu0 0.0
  %1426 = vmatprep.subr.mxu0 0.0
  %1427 = vmatpush1.msra.mxu0 0.0
  %1428 = vmatprep.subr.mxu0 0.0
  %1429 = vmatpush1.msra.mxu0 0.0
  %1430 = vmatprep.subr.mxu0 0.0
  %1431 = vmatpush1.msra.mxu0 0.0
  %1432 = vmatprep.subr.mxu0 0.0
  %1433 = vmatpush1.msra.mxu0 0.0
  %1434 = vmatprep.subr.mxu0 0.0
  %1435 = vmatpush1.msra.mxu0 %v992
  %1436 = vmatprep.subr.mxu0 0.0
  %1437 = vmatpush1.msra.mxu0 %v991
  %1438 = vmatprep.subr.mxu0 0.0
  %1439 = vmatpush1.msra.mxu0 %v990
  %1440 = vmatprep.subr.mxu0 0.0
  %1441 = vmatpush1.msra.mxu0 %v989
  %1442 = vmatprep.subr.mxu0 0.0
  %1443 = vmatpush2.msra.mxu0 0.0
  %1444 = vmatprep.subr.mxu0 0.0
  %1445 = vmatpush2.msra.mxu0 0.0
  %1446 = vmatprep.subr.mxu0 0.0
  %1447 = vmatpush2.msra.mxu0 0.0
  %1448 = vmatprep.subr.mxu0 0.0
  %1449 = vmatpush2.msra.mxu0 0.0
  %1450 = vmatprep.subr.mxu0 0.0
  %1451 = vmatpush2.msra.mxu0 0.0
  %1452 = vmatprep.subr.mxu0 0.0
  %1453 = vmatpush2.msra.mxu0 0.0
  %1454 = vmatprep.subr.mxu0 0.0
  %1455 = vmatpush2.msra.mxu0 0.0
  %1456 = vmatprep.subr.mxu0 0.0
  %1457 = vmatpush2.msra.mxu0 0.0
  %1458 = vmatprep.subr.mxu0 0.0
  %1459 = vmatpush2.msra.mxu0 0.0
  %1460 = vmatprep.subr.mxu0 0.0
  %1461 = vmatpush2.msra.mxu0 0.0
  %1462 = vmatprep.subr.mxu0 0.0
  %1463 = vmatpush2.msra.mxu0 0.0
  %1464 = vmatprep.subr.mxu0 0.0
  %1465 = vmatpush2.msra.mxu0 0.0
  %1466 = vmatprep.subr.mxu0 0.0
  %1467 = vmatpush2.msra.mxu0 0.0
  %1468 = vmatprep.subr.mxu0 0.0
  %1469 = vmatpush2.msra.mxu0 0.0
  %1470 = vmatprep.subr.mxu0 0.0
  %1471 = vmatpush2.msra.mxu0 0.0
  %1472 = vmatprep.subr.mxu0 0.0
  %1473 = vmatpush2.msra.mxu0 0.0
  %1474 = vmatprep.mubr.f32.mxu0 0.0
  %1475 = vmatmul.mubr.f32.gmra.mxu0 %v1408
  %v1476 = vpop.f32.mrf.mxu0
  %v1477 = vadd.f32 0.0, %v1476
  %v1478 = vpop.f32.mrf.mxu0
  %1479 = vdwg.mxu0
  %v1480 = vadd.f32 %v1087, %v1477
  %v1481 = vxor.u32 %v1480, 2147483648
  %v1482 = vmul.f32 %v1481, 1.442695
  %v1483 = vpow.pop %v1482
  %v1484 = vadd.f32 %v1483, 1.0
  %v1485 = vrcp.pop %v1484
  %v1486 = vmul.f32 1.0, %v1485
  %v1487 = vtanh.pop %v1480
  %v1488 = vmul.f32 %v1486, %v1398
  %1490 = vrot.lane.b32.xlu0 %v1487, 64
  %v1491 = vpop.permute.xlu0 %1490
  %v1493 = vmul.f32 %v1486, %v1491
  %1495 = vrot.lane.b32.xlu0 %v1493, 32
  %v1496 = vpop.permute.xlu0 %1495
  %v1498 = vadd.f32 %v1488, %v1496
  %v1499 = vtanh.pop %v1498
  %1501 = vrot.lane.b32.xlu0 %v1499, 64
  %v1502 = vpop.permute.xlu0 %1501
  %v1504 = vmul.f32 %v1486, %v1502
  %1506 = vrot.lane.b32.xlu0 %v1504, 32
  %v1507 = vpop.permute.xlu0 %1506
  %v1508 = vsel %vm186, %v1507, 0
  %1510 = vmatprep.subr.mxu0 0.0
  %1511 = vmatpush1.msra.mxu0 0.0
  %1512 = vmatprep.subr.mxu0 0.0
  %1513 = vmatpush1.msra.mxu0 0.0
  %1514 = vmatprep.subr.mxu0 0.0
  %1515 = vmatpush1.msra.mxu0 0.0
  %1516 = vmatprep.subr.mxu0 0.0
  %1517 = vmatpush1.msra.mxu0 0.0
  %1518 = vmatprep.subr.mxu0 0.0
  %1519 = vmatpush1.msra.mxu0 0.0
  %1520 = vmatprep.subr.mxu0 0.0
  %1521 = vmatpush1.msra.mxu0 0.0
  %1522 = vmatprep.subr.mxu0 0.0
  %1523 = vmatpush1.msra.mxu0 0.0
  %1524 = vmatprep.subr.mxu0 0.0
  %1525 = vmatpush1.msra.mxu0 0.0
  %1526 = vmatprep.subr.mxu0 0.0
  %1527 = vmatpush1.msra.mxu0 0.0
  %1528 = vmatprep.subr.mxu0 0.0
  %1529 = vmatpush1.msra.mxu0 0.0
  %1530 = vmatprep.subr.mxu0 0.0
  %1531 = vmatpush1.msra.mxu0 0.0
  %1532 = vmatprep.subr.mxu0 0.0
  %1533 = vmatpush1.msra.mxu0 0.0
  %1534 = vmatprep.subr.mxu0 0.0
  %1535 = vmatpush1.msra.mxu0 %v992
  %1536 = vmatprep.subr.mxu0 0.0
  %1537 = vmatpush1.msra.mxu0 %v991
  %1538 = vmatprep.subr.mxu0 0.0
  %1539 = vmatpush1.msra.mxu0 %v990
  %1540 = vmatprep.subr.mxu0 0.0
  %1541 = vmatpush1.msra.mxu0 %v989
  %1542 = vmatprep.subr.mxu0 0.0
  %1543 = vmatpush2.msra.mxu0 0.0
  %1544 = vmatprep.subr.mxu0 0.0
  %1545 = vmatpush2.msra.mxu0 0.0
  %1546 = vmatprep.subr.mxu0 0.0
  %1547 = vmatpush2.msra.mxu0 0.0
  %1548 = vmatprep.subr.mxu0 0.0
  %1549 = vmatpush2.msra.mxu0 0.0
  %1550 = vmatprep.subr.mxu0 0.0
  %1551 = vmatpush2.msra.mxu0 0.0
  %1552 = vmatprep.subr.mxu0 0.0
  %1553 = vmatpush2.msra.mxu0 0.0
  %1554 = vmatprep.subr.mxu0 0.0
  %1555 = vmatpush2.msra.mxu0 0.0
  %1556 = vmatprep.subr.mxu0 0.0
  %1557 = vmatpush2.msra.mxu0 0.0
  %1558 = vmatprep.subr.mxu0 0.0
  %1559 = vmatpush2.msra.mxu0 0.0
  %1560 = vmatprep.subr.mxu0 0.0
  %1561 = vmatpush2.msra.mxu0 0.0
  %1562 = vmatprep.subr.mxu0 0.0
  %1563 = vmatpush2.msra.mxu0 0.0
  %1564 = vmatprep.subr.mxu0 0.0
  %1565 = vmatpush2.msra.mxu0 0.0
  %1566 = vmatprep.subr.mxu0 0.0
  %1567 = vmatpush2.msra.mxu0 0.0
  %1568 = vmatprep.subr.mxu0 0.0
  %1569 = vmatpush2.msra.mxu0 0.0
  %1570 = vmatprep.subr.mxu0 0.0
  %1571 = vmatpush2.msra.mxu0 0.0
  %1572 = vmatprep.subr.mxu0 0.0
  %1573 = vmatpush2.msra.mxu0 0.0
  %1574 = vmatprep.mubr.f32.mxu0 0.0
  %1575 = vmatmul.mubr.f32.gmra.mxu0 %v1508
  %v1576 = vpop.f32.mrf.mxu0
  %v1577 = vadd.f32 0.0, %v1576
  %v1578 = vpop.f32.mrf.mxu0
  %1579 = vdwg.mxu0
  %v1580 = vadd.f32 %v1092, %v1577
  %v1581 = vxor.u32 %v1580, 2147483648
  %v1582 = vmul.f32 %v1581, 1.442695
  %v1583 = vpow.pop %v1582
  %v1584 = vadd.f32 %v1583, 1.0
  %v1585 = vrcp.pop %v1584
  %v1586 = vmul.f32 1.0, %v1585
  %v1587 = vtanh.pop %v1580
  %v1588 = vmul.f32 %v1586, %v1498
  %1590 = vrot.lane.b32.xlu0 %v1587, 64
  %v1591 = vpop.permute.xlu0 %1590
  %v1593 = vmul.f32 %v1586, %v1591
  %1595 = vrot.lane.b32.xlu0 %v1593, 32
  %v1596 = vpop.permute.xlu0 %1595
  %v1598 = vadd.f32 %v1588, %v1596
  %v1599 = vtanh.pop %v1598
  %1601 = vrot.lane.b32.xlu0 %v1599, 64
  %v1602 = vpop.permute.xlu0 %1601
  %v1604 = vmul.f32 %v1586, %v1602
  %1606 = vrot.lane.b32.xlu0 %v1604, 32
  %v1607 = vpop.permute.xlu0 %1606
  %v1608 = vsel %vm186, %v1607, 0
  %1610 = vmatprep.subr.mxu0 0.0
  %1611 = vmatpush1.msra.mxu0 0.0
  %1612 = vmatprep.subr.mxu0 0.0
  %1613 = vmatpush1.msra.mxu0 0.0
  %1614 = vmatprep.subr.mxu0 0.0
  %1615 = vmatpush1.msra.mxu0 0.0
  %1616 = vmatprep.subr.mxu0 0.0
  %1617 = vmatpush1.msra.mxu0 0.0
  %1618 = vmatprep.subr.mxu0 0.0
  %1619 = vmatpush1.msra.mxu0 0.0
  %1620 = vmatprep.subr.mxu0 0.0
  %1621 = vmatpush1.msra.mxu0 0.0
  %1622 = vmatprep.subr.mxu0 0.0
  %1623 = vmatpush1.msra.mxu0 0.0
  %1624 = vmatprep.subr.mxu0 0.0
  %1625 = vmatpush1.msra.mxu0 0.0
  %1626 = vmatprep.subr.mxu0 0.0
  %1627 = vmatpush1.msra.mxu0 0.0
  %1628 = vmatprep.subr.mxu0 0.0
  %1629 = vmatpush1.msra.mxu0 0.0
  %1630 = vmatprep.subr.mxu0 0.0
  %1631 = vmatpush1.msra.mxu0 0.0
  %1632 = vmatprep.subr.mxu0 0.0
  %1633 = vmatpush1.msra.mxu0 0.0
  %1634 = vmatprep.subr.mxu0 0.0
  %1635 = vmatpush1.msra.mxu0 %v992
  %1636 = vmatprep.subr.mxu0 0.0
  %1637 = vmatpush1.msra.mxu0 %v991
  %1638 = vmatprep.subr.mxu0 0.0
  %1639 = vmatpush1.msra.mxu0 %v990
  %1640 = vmatprep.subr.mxu0 0.0
  %1641 = vmatpush1.msra.mxu0 %v989
  %1642 = vmatprep.subr.mxu0 0.0
  %1643 = vmatpush2.msra.mxu0 0.0
  %1644 = vmatprep.subr.mxu0 0.0
  %1645 = vmatpush2.msra.mxu0 0.0
  %1646 = vmatprep.subr.mxu0 0.0
  %1647 = vmatpush2.msra.mxu0 0.0
  %1648 = vmatprep.subr.mxu0 0.0
  %1649 = vmatpush2.msra.mxu0 0.0
  %1650 = vmatprep.subr.mxu0 0.0
  %1651 = vmatpush2.msra.mxu0 0.0
  %1652 = vmatprep.subr.mxu0 0.0
  %1653 = vmatpush2.msra.mxu0 0.0
  %1654 = vmatprep.subr.mxu0 0.0
  %1655 = vmatpush2.msra.mxu0 0.0
  %1656 = vmatprep.subr.mxu0 0.0
  %1657 = vmatpush2.msra.mxu0 0.0
  %1658 = vmatprep.subr.mxu0 0.0
  %1659 = vmatpush2.msra.mxu0 0.0
  %1660 = vmatprep.subr.mxu0 0.0
  %1661 = vmatpush2.msra.mxu0 0.0
  %1662 = vmatprep.subr.mxu0 0.0
  %1663 = vmatpush2.msra.mxu0 0.0
  %1664 = vmatprep.subr.mxu0 0.0
  %1665 = vmatpush2.msra.mxu0 0.0
  %1666 = vmatprep.subr.mxu0 0.0
  %1667 = vmatpush2.msra.mxu0 0.0
  %1668 = vmatprep.subr.mxu0 0.0
  %1669 = vmatpush2.msra.mxu0 0.0
  %1670 = vmatprep.subr.mxu0 0.0
  %1671 = vmatpush2.msra.mxu0 0.0
  %1672 = vmatprep.subr.mxu0 0.0
  %1673 = vmatpush2.msra.mxu0 0.0
  %1674 = vmatprep.mubr.f32.mxu0 0.0
  %1675 = vmatmul.mubr.f32.gmra.mxu0 %v1608
  %v1676 = vpop.f32.mrf.mxu0
  %v1677 = vadd.f32 0.0, %v1676
  %v1678 = vpop.f32.mrf.mxu0
  %1679 = vdwg.mxu0
  %v1680 = vadd.f32 %v1097, %v1677
  %v1681 = vxor.u32 %v1680, 2147483648
  %v1682 = vmul.f32 %v1681, 1.442695
  %v1683 = vpow.pop %v1682
  %v1684 = vadd.f32 %v1683, 1.0
  %v1685 = vrcp.pop %v1684
  %v1686 = vmul.f32 1.0, %v1685
  %v1687 = vtanh.pop %v1680
  %v1688 = vmul.f32 %v1686, %v1598
  %1690 = vrot.lane.b32.xlu0 %v1687, 64
  %v1691 = vpop.permute.xlu0 %1690
  %v1693 = vmul.f32 %v1686, %v1691
  %1695 = vrot.lane.b32.xlu0 %v1693, 32
  %v1696 = vpop.permute.xlu0 %1695
  %v1698 = vadd.f32 %v1688, %v1696
  %v1699 = vtanh.pop %v1698
  %1701 = vrot.lane.b32.xlu0 %v1699, 64
  %v1702 = vpop.permute.xlu0 %1701
  %v1704 = vmul.f32 %v1686, %v1702
  %1706 = vrot.lane.b32.xlu0 %v1704, 32
  %v1707 = vpop.permute.xlu0 %1706
  %v1708 = vsel %vm186, %v1707, 0
  %1710 = vmatprep.subr.mxu0 0.0
  %1711 = vmatpush1.msra.mxu0 0.0
  %1712 = vmatprep.subr.mxu0 0.0
  %1713 = vmatpush1.msra.mxu0 0.0
  %1714 = vmatprep.subr.mxu0 0.0
  %1715 = vmatpush1.msra.mxu0 0.0
  %1716 = vmatprep.subr.mxu0 0.0
  %1717 = vmatpush1.msra.mxu0 0.0
  %1718 = vmatprep.subr.mxu0 0.0
  %1719 = vmatpush1.msra.mxu0 0.0
  %1720 = vmatprep.subr.mxu0 0.0
  %1721 = vmatpush1.msra.mxu0 0.0
  %1722 = vmatprep.subr.mxu0 0.0
  %1723 = vmatpush1.msra.mxu0 0.0
  %1724 = vmatprep.subr.mxu0 0.0
  %1725 = vmatpush1.msra.mxu0 0.0
  %1726 = vmatprep.subr.mxu0 0.0
  %1727 = vmatpush1.msra.mxu0 0.0
  %1728 = vmatprep.subr.mxu0 0.0
  %1729 = vmatpush1.msra.mxu0 0.0
  %1730 = vmatprep.subr.mxu0 0.0
  %1731 = vmatpush1.msra.mxu0 0.0
  %1732 = vmatprep.subr.mxu0 0.0
  %1733 = vmatpush1.msra.mxu0 0.0
  %1734 = vmatprep.subr.mxu0 0.0
  %1735 = vmatpush1.msra.mxu0 %v992
  %1736 = vmatprep.subr.mxu0 0.0
  %1737 = vmatpush1.msra.mxu0 %v991
  %1738 = vmatprep.subr.mxu0 0.0
  %1739 = vmatpush1.msra.mxu0 %v990
  %1740 = vmatprep.subr.mxu0 0.0
  %1741 = vmatpush1.msra.mxu0 %v989
  %1742 = vmatprep.subr.mxu0 0.0
  %1743 = vmatpush2.msra.mxu0 0.0
  %1744 = vmatprep.subr.mxu0 0.0
  %1745 = vmatpush2.msra.mxu0 0.0
  %1746 = vmatprep.subr.mxu0 0.0
  %1747 = vmatpush2.msra.mxu0 0.0
  %1748 = vmatprep.subr.mxu0 0.0
  %1749 = vmatpush2.msra.mxu0 0.0
  %1750 = vmatprep.subr.mxu0 0.0
  %1751 = vmatpush2.msra.mxu0 0.0
  %1752 = vmatprep.subr.mxu0 0.0
  %1753 = vmatpush2.msra.mxu0 0.0
  %1754 = vmatprep.subr.mxu0 0.0
  %1755 = vmatpush2.msra.mxu0 0.0
  %1756 = vmatprep.subr.mxu0 0.0
  %1757 = vmatpush2.msra.mxu0 0.0
  %1758 = vmatprep.subr.mxu0 0.0
  %1759 = vmatpush2.msra.mxu0 0.0
  %1760 = vmatprep.subr.mxu0 0.0
  %1761 = vmatpush2.msra.mxu0 0.0
  %1762 = vmatprep.subr.mxu0 0.0
  %1763 = vmatpush2.msra.mxu0 0.0
  %1764 = vmatprep.subr.mxu0 0.0
  %1765 = vmatpush2.msra.mxu0 0.0
  %1766 = vmatprep.subr.mxu0 0.0
  %1767 = vmatpush2.msra.mxu0 0.0
  %1768 = vmatprep.subr.mxu0 0.0
  %1769 = vmatpush2.msra.mxu0 0.0
  %1770 = vmatprep.subr.mxu0 0.0
  %1771 = vmatpush2.msra.mxu0 0.0
  %1772 = vmatprep.subr.mxu0 0.0
  %1773 = vmatpush2.msra.mxu0 0.0
  %1774 = vmatprep.mubr.f32.mxu0 0.0
  %1775 = vmatmul.mubr.f32.gmra.mxu0 %v1708
  %v1776 = vpop.f32.mrf.mxu0
  %v1777 = vadd.f32 0.0, %v1776
  %v1778 = vpop.f32.mrf.mxu0
  %1779 = vdwg.mxu0
  %v1780 = vadd.f32 %v1102, %v1777
  %v1781 = vxor.u32 %v1780, 2147483648
  %v1782 = vmul.f32 %v1781, 1.442695
  %v1783 = vpow.pop %v1782
  %v1784 = vadd.f32 %v1783, 1.0
  %v1785 = vrcp.pop %v1784
  %v1786 = vmul.f32 1.0, %v1785
  %v1787 = vtanh.pop %v1780
  %v1788 = vmul.f32 %v1786, %v1698
  %1790 = vrot.lane.b32.xlu0 %v1787, 64
  %v1791 = vpop.permute.xlu0 %1790
  %v1793 = vmul.f32 %v1786, %v1791
  %1795 = vrot.lane.b32.xlu0 %v1793, 32
  %v1796 = vpop.permute.xlu0 %1795
  %v1798 = vadd.f32 %v1788, %v1796
  %v1799 = vtanh.pop %v1798
  %1801 = vrot.lane.b32.xlu0 %v1799, 64
  %v1802 = vpop.permute.xlu0 %1801
  %v1804 = vmul.f32 %v1786, %v1802
  %1806 = vrot.lane.b32.xlu0 %v1804, 32
  %v1807 = vpop.permute.xlu0 %1806
  %v1808 = vsel %vm186, %v1807, 0
  %1810 = vmatprep.subr.mxu0 0.0
  %1811 = vmatpush1.msra.mxu0 0.0
  %1812 = vmatprep.subr.mxu0 0.0
  %1813 = vmatpush1.msra.mxu0 0.0
  %1814 = vmatprep.subr.mxu0 0.0
  %1815 = vmatpush1.msra.mxu0 0.0
  %1816 = vmatprep.subr.mxu0 0.0
  %1817 = vmatpush1.msra.mxu0 0.0
  %1818 = vmatprep.subr.mxu0 0.0
  %1819 = vmatpush1.msra.mxu0 0.0
  %1820 = vmatprep.subr.mxu0 0.0
  %1821 = vmatpush1.msra.mxu0 0.0
  %1822 = vmatprep.subr.mxu0 0.0
  %1823 = vmatpush1.msra.mxu0 0.0
  %1824 = vmatprep.subr.mxu0 0.0
  %1825 = vmatpush1.msra.mxu0 0.0
  %1826 = vmatprep.subr.mxu0 0.0
  %1827 = vmatpush1.msra.mxu0 0.0
  %1828 = vmatprep.subr.mxu0 0.0
  %1829 = vmatpush1.msra.mxu0 0.0
  %1830 = vmatprep.subr.mxu0 0.0
  %1831 = vmatpush1.msra.mxu0 0.0
  %1832 = vmatprep.subr.mxu0 0.0
  %1833 = vmatpush1.msra.mxu0 0.0
  %1834 = vmatprep.subr.mxu0 0.0
  %1835 = vmatpush1.msra.mxu0 %v992
  %1836 = vmatprep.subr.mxu0 0.0
  %1837 = vmatpush1.msra.mxu0 %v991
  %1838 = vmatprep.subr.mxu0 0.0
  %1839 = vmatpush1.msra.mxu0 %v990
  %1840 = vmatprep.subr.mxu0 0.0
  %1841 = vmatpush1.msra.mxu0 %v989
  %1842 = vmatprep.subr.mxu0 0.0
  %1843 = vmatpush2.msra.mxu0 0.0
  %1844 = vmatprep.subr.mxu0 0.0
  %1845 = vmatpush2.msra.mxu0 0.0
  %1846 = vmatprep.subr.mxu0 0.0
  %1847 = vmatpush2.msra.mxu0 0.0
  %1848 = vmatprep.subr.mxu0 0.0
  %1849 = vmatpush2.msra.mxu0 0.0
  %1850 = vmatprep.subr.mxu0 0.0
  %1851 = vmatpush2.msra.mxu0 0.0
  %1852 = vmatprep.subr.mxu0 0.0
  %1853 = vmatpush2.msra.mxu0 0.0
  %1854 = vmatprep.subr.mxu0 0.0
  %1855 = vmatpush2.msra.mxu0 0.0
  %1856 = vmatprep.subr.mxu0 0.0
  %1857 = vmatpush2.msra.mxu0 0.0
  %1858 = vmatprep.subr.mxu0 0.0
  %1859 = vmatpush2.msra.mxu0 0.0
  %1860 = vmatprep.subr.mxu0 0.0
  %1861 = vmatpush2.msra.mxu0 0.0
  %1862 = vmatprep.subr.mxu0 0.0
  %1863 = vmatpush2.msra.mxu0 0.0
  %1864 = vmatprep.subr.mxu0 0.0
  %1865 = vmatpush2.msra.mxu0 0.0
  %1866 = vmatprep.subr.mxu0 0.0
  %1867 = vmatpush2.msra.mxu0 0.0
  %1868 = vmatprep.subr.mxu0 0.0
  %1869 = vmatpush2.msra.mxu0 0.0
  %1870 = vmatprep.subr.mxu0 0.0
  %1871 = vmatpush2.msra.mxu0 0.0
  %1872 = vmatprep.subr.mxu0 0.0
  %1873 = vmatpush2.msra.mxu0 0.0
  %1874 = vmatprep.mubr.f32.mxu0 0.0
  %1875 = vmatmul.mubr.f32.gmra.mxu0 %v1808
  %v1876 = vpop.f32.mrf.mxu0
  %v1877 = vadd.f32 0.0, %v1876
  %v1878 = vpop.f32.mrf.mxu0
  %1879 = vdwg.mxu0
  %v1880 = vadd.f32 %v1107, %v1877
  %v1881 = vxor.u32 %v1880, 2147483648
  %v1882 = vmul.f32 %v1881, 1.442695
  %v1883 = vpow.pop %v1882
  %v1884 = vadd.f32 %v1883, 1.0
  %v1885 = vrcp.pop %v1884
  %v1886 = vmul.f32 1.0, %v1885
  %v1887 = vtanh.pop %v1880
  %v1888 = vmul.f32 %v1886, %v1798
  %1890 = vrot.lane.b32.xlu0 %v1887, 64
  %v1891 = vpop.permute.xlu0 %1890
  %v1893 = vmul.f32 %v1886, %v1891
  %1895 = vrot.lane.b32.xlu0 %v1893, 32
  %v1896 = vpop.permute.xlu0 %1895
  %v1898 = vadd.f32 %v1888, %v1896
  %v1899 = vtanh.pop %v1898
  %1901 = vrot.lane.b32.xlu0 %v1899, 64
  %v1902 = vpop.permute.xlu0 %1901
  %v1904 = vmul.f32 %v1886, %v1902
  %v1905 = vld [vmem:[%s7] sm:$0xff]
  %v1906 = vld [vmem:[%s7 + $0x8] sm:$0xff]
  %v1907 = vld [vmem:[%s7 + $0x10] sm:$0xff]
  %v1908 = vld [vmem:[%s7 + $0x18] sm:$0xff]
  %v1909 = vld [vmem:[%s8] sm:$0x1]
  %v1911 = vlaneseq
  %v1912 = vshrl.u32 %v1911, 7
  %v1913 = vsub.s32 0, %v1912
  %v1914 = vrot.slane %v1909, %v1913
  %1917 = vrot.lane.b32.xlu0 %v1904, 32
  %v1918 = vpop.permute.xlu0 %1917
  %v1919 = vsel %vm186, %v1918, 0
  %1921 = vmatprep.subr.mxu0 0.0
  %1922 = vmatpush1.msra.mxu0 0.0
  %1923 = vmatprep.subr.mxu0 0.0
  %1924 = vmatpush1.msra.mxu0 0.0
  %1925 = vmatprep.subr.mxu0 0.0
  %1926 = vmatpush1.msra.mxu0 0.0
  %1927 = vmatprep.subr.mxu0 0.0
  %1928 = vmatpush1.msra.mxu0 0.0
  %1929 = vmatprep.subr.mxu0 0.0
  %1930 = vmatpush1.msra.mxu0 0.0
  %1931 = vmatprep.subr.mxu0 0.0
  %1932 = vmatpush1.msra.mxu0 0.0
  %1933 = vmatprep.subr.mxu0 0.0
  %1934 = vmatpush1.msra.mxu0 0.0
  %1935 = vmatprep.subr.mxu0 0.0
  %1936 = vmatpush1.msra.mxu0 0.0
  %1937 = vmatprep.subr.mxu0 0.0
  %1938 = vmatpush1.msra.mxu0 0.0
  %1939 = vmatprep.subr.mxu0 0.0
  %1940 = vmatpush1.msra.mxu0 0.0
  %1941 = vmatprep.subr.mxu0 0.0
  %1942 = vmatpush1.msra.mxu0 0.0
  %1943 = vmatprep.subr.mxu0 0.0
  %1944 = vmatpush1.msra.mxu0 0.0
  %1945 = vmatprep.subr.mxu0 0.0
  %1946 = vmatpush1.msra.mxu0 %v1908
  %1947 = vmatprep.subr.mxu0 0.0
  %1948 = vmatpush1.msra.mxu0 %v1907
  %1949 = vmatprep.subr.mxu0 0.0
  %1950 = vmatpush1.msra.mxu0 %v1906
  %1951 = vmatprep.subr.mxu0 0.0
  %1952 = vmatpush1.msra.mxu0 %v1905
  %1953 = vmatprep.subr.mxu0 0.0
  %1954 = vmatpush2.msra.mxu0 0.0
  %1955 = vmatprep.subr.mxu0 0.0
  %1956 = vmatpush2.msra.mxu0 0.0
  %1957 = vmatprep.subr.mxu0 0.0
  %1958 = vmatpush2.msra.mxu0 0.0
  %1959 = vmatprep.subr.mxu0 0.0
  %1960 = vmatpush2.msra.mxu0 0.0
  %1961 = vmatprep.subr.mxu0 0.0
  %1962 = vmatpush2.msra.mxu0 0.0
  %1963 = vmatprep.subr.mxu0 0.0
  %1964 = vmatpush2.msra.mxu0 0.0
  %1965 = vmatprep.subr.mxu0 0.0
  %1966 = vmatpush2.msra.mxu0 0.0
  %1967 = vmatprep.subr.mxu0 0.0
  %1968 = vmatpush2.msra.mxu0 0.0
  %1969 = vmatprep.subr.mxu0 0.0
  %1970 = vmatpush2.msra.mxu0 0.0
  %1971 = vmatprep.subr.mxu0 0.0
  %1972 = vmatpush2.msra.mxu0 0.0
  %1973 = vmatprep.subr.mxu0 0.0
  %1974 = vmatpush2.msra.mxu0 0.0
  %1975 = vmatprep.subr.mxu0 0.0
  %1976 = vmatpush2.msra.mxu0 0.0
  %1977 = vmatprep.subr.mxu0 0.0
  %1978 = vmatpush2.msra.mxu0 0.0
  %1979 = vmatprep.subr.mxu0 0.0
  %1980 = vmatpush2.msra.mxu0 0.0
  %1981 = vmatprep.subr.mxu0 0.0
  %1982 = vmatpush2.msra.mxu0 0.0
  %1983 = vmatprep.subr.mxu0 0.0
  %1984 = vmatpush2.msra.mxu0 0.0
  %1985 = vmatprep.mubr.f32.mxu0 0.0
  %1986 = vmatmul.mubr.f32.gmra.mxu0 %v1919
  %v1987 = vpop.f32.mrf.mxu0
  %v1988 = vadd.f32 %v1914, %v1987
  %v1989 = vpop.f32.mrf.mxu0
  %1990 = vdwg.mxu0
  %1991 = vst [vmem:[%s9] sm:$0xff] %v1988
  // Predicated region
  $region38: #{fwd.1} parent=0 // pred_check
    _
  $region39: #{fwd.1} parent=0 // pred_check_branch
    %1993 = sbr.rel (0) target = $region41
  $region40: #{fwd.1} parent=0 // pred_region
    _
  $region41: #{fwd.1} parent=0 // pred_fallthru
    _
  // Predicated region
  $region42: #{fwd.1} parent=0 // pred_check
    _
  $region43: #{fwd.1} parent=0 // pred_check_branch
    %1995 = sbr.rel (0) target = $region45
  $region44: #{fwd.1} parent=0 // pred_region
    _
  $region45: #{fwd.1} parent=0 // pred_fallthru
    _

</llo_original>
